<compile_context>
chip_gen: v7x
topology: tpu7x:2x2x1
jax: 0.10.0
libtpu: 0.0.40
codegen_flags: <defaults>
</compile_context>

<pallas_src>
import functools
import numpy as np

import jax
import jax.numpy as jnp
from jax.experimental import pallas as pl
from jax.experimental.pallas import tpu as pltpu

_IN_CH = 4
_IMG = 16
_LRELU = 0.2


# ----------------------------- Pallas kernel ------------------------------ #
def _critic_kernel(x0_ref,
                   sel1_ref, band1_ref, b1_ref,
                   sel2_ref, band2_ref, b2_ref,
                   w3t_ref, selb_ref, b3_ref,
                   o_ref):
    """Fused conv1+conv2+conv3 critic.  All activations live in VMEM.

    Layout of every activation:  rows = (batch, h_out), lanes = (w_out, c).
    conv1 / conv2 outputs are therefore exactly 128 lanes wide (lane-dense).
    """
    f32 = jnp.float32
    x0 = x0_ref[...]                                     # (B*16, 64)

    # ---- conv1: 4x4, stride 2, pad 1, 4 -> 16 ch, LeakyReLU(0.2) ----------
    r1 = sel1_ref.shape[1]
    n1 = band1_ref.shape[2]
    acc1 = jnp.zeros((r1, n1), f32)
    for i in range(sel1_ref.shape[0]):                   # static unroll (4 kernel rows)
        rows = jnp.dot(sel1_ref[i], x0, preferred_element_type=f32)      # row gather
        acc1 = acc1 + jnp.dot(rows, band1_ref[i], preferred_element_type=f32)
    h1 = acc1 + b1_ref[...]
    h1 = jnp.where(h1 >= 0.0, h1, _LRELU * h1)           # (B*8, 128), lanes = (w, c)

    # ---- conv2: 4x4, stride 2, pad 1, 16 -> 32 ch, LeakyReLU(0.2) ---------
    r2 = sel2_ref.shape[1]
    n2 = band2_ref.shape[2]
    acc2 = jnp.zeros((r2, n2), f32)
    for i in range(sel2_ref.shape[0]):
        rows = jnp.dot(sel2_ref[i], h1, preferred_element_type=f32)
        acc2 = acc2 + jnp.dot(rows, band2_ref[i], preferred_element_type=f32)
    h2 = acc2 + b2_ref[...]
    h2 = jnp.where(h2 >= 0.0, h2, _LRELU * h2)           # (B*4, 128), lanes = (w, c)

    # ---- conv3: 4x4, stride 1, pad 0, 32 -> 1 ch (full contraction) -------
    # Cout = 1: keep it off the MXU -- VPU multiply + reductions.
    t = h2 * w3t_ref[...]                                # (B*4, 128)
    per_b = jnp.dot(selb_ref[...], t, preferred_element_type=f32)   # (B, 128) per-batch row sum
    score = jnp.sum(per_b, axis=1, keepdims=True) + b3_ref[...]     # (B, 1)
    o_ref[...] = score.astype(o_ref.dtype)


# --------------------- one-time weight repacking (no jit) ------------------ #
def prepare_critic_params(params, batch, img=_IMG):
    """Repack PyTorch-layout (OIHW) conv weights into the fused-kernel layout.

    Done once, outside jit, so nothing here sits in the per-call path.
    """
    def conv_band_sel(W, Hin, Win, stride, pad):
        W = np.asarray(W, np.float32)                    # (Cout, Cin, K, K)
        Cout, Cin, K, _ = W.shape
        Hout = (Hin + 2 * pad - K) // stride + 1
        Wout = (Win + 2 * pad - K) // stride + 1
        # Banded weight for one kernel row i: maps lanes (w_in, c_in) ->
        # lanes (w_out, c_out); horizontal zero-padding is implicit (zeros).
        band = np.zeros((K, Win * Cin, Wout * Cout), np.float32)
        for i in range(K):
            for wo in range(Wout):
                for j in range(K):
                    wi = stride * wo + j - pad
                    if 0 <= wi < Win:
                        band[i, wi * Cin:(wi + 1) * Cin,
                             wo * Cout:(wo + 1) * Cout] = W[:, :, i, j].T
        # 0/1 row-selection: output row (b, ho) reads input row (b, s*ho+i-pad);
        # vertical zero-padding == all-zero selection rows.
        sel = np.zeros((K, batch * Hout, batch * Hin), np.float32)
        for i in range(K):
            for b in range(batch):
                for ho in range(Hout):
                    hi = stride * ho + i - pad
                    if 0 <= hi < Hin:
                        sel[i, b * Hout + ho, b * Hin + hi] = 1.0
        return band, sel, Hout, Wout, Cout

    band1, sel1, H1, W1o, C1 = conv_band_sel(params["conv1_w"], img, img, 2, 1)
    band2, sel2, H2, W2o, C2 = conv_band_sel(params["conv2_w"], H1, W1o, 2, 1)

    b1 = np.asarray(params["conv1_b"], np.float32)
    b2 = np.asarray(params["conv2_b"], np.float32)
    b3 = np.asarray(params["conv3_b"], np.float32)
    W3 = np.asarray(params["conv3_w"], np.float32)       # (1, C2, 4, 4)

    b1row = np.tile(b1, W1o)[None, :]                    # (1, W1o*C1) = (1, 128)
    b2row = np.tile(b2, W2o)[None, :]                    # (1, W2o*C2) = (1, 128)

    # conv3 contracts the whole (h, w, c) conv2 output; lay its weights out to
    # match the (rows=(b,h), lanes=(w,c)) activation layout.
    w3m = np.transpose(W3[0], (1, 2, 0)).reshape(H2, W2o * C2)   # (4, 128)
    w3t = np.tile(w3m, (batch, 1))                               # (B*4, 128)
    selb = np.zeros((batch, batch * H2), np.float32)             # per-batch row sum
    for b in range(batch):
        selb[b, b * H2:(b + 1) * H2] = 1.0
    b3arr = b3.reshape(1, 1)

    to = lambda a: jnp.asarray(a, jnp.float32)
    return {
        "sel1": to(sel1), "band1": to(band1), "b1": to(b1row),
        "sel2": to(sel2), "band2": to(band2), "b2": to(b2row),
        "w3t": to(w3t), "selb": to(selb), "b3": to(b3arr),
    }


# ------------------------------ forward pass ------------------------------- #
@jax.jit
def critic_forward(prep, x_nchw):
    B, C, H, W = x_nchw.shape
    # Input-side glue only: NCHW -> 2-D (rows=(b, h), lanes=(w, c)).
    x0 = jnp.transpose(x_nchw, (0, 2, 3, 1)).astype(jnp.float32).reshape(B * H, W * C)

    args = (x0, prep["sel1"], prep["band1"], prep["b1"],
            prep["sel2"], prep["band2"], prep["b2"],
            prep["w3t"], prep["selb"], prep["b3"])

    # Advisory cost estimate (static shapes).
    kk = prep["sel1"].shape[0]
    r1, k1 = prep["sel1"].shape[1], prep["sel1"].shape[2]
    kb1, n1 = prep["band1"].shape[1], prep["band1"].shape[2]
    r2, k2 = prep["sel2"].shape[1], prep["sel2"].shape[2]
    kb2, n2 = prep["band2"].shape[1], prep["band2"].shape[2]
    flops = (2 * kk * (r1 * k1 * x0.shape[1] + r1 * kb1 * n1)
             + 2 * kk * (r2 * k2 * kb2 + r2 * kb2 * n2)
             + 4 * prep["w3t"].shape[0] * prep["w3t"].shape[1]
             + 2 * B * prep["selb"].shape[1] * n2)
    bytes_accessed = sum(a.size * a.dtype.itemsize for a in args) + B * 4

    vmem = pl.BlockSpec(memory_space=pltpu.MemorySpace.VMEM)
    score = pl.pallas_call(
        _critic_kernel,
        out_shape=jax.ShapeDtypeStruct((B, 1), jnp.float32),
        in_specs=[vmem] * len(args),
        out_specs=vmem,
        cost_estimate=pl.CostEstimate(flops=int(flops), transcendentals=0,
                                      bytes_accessed=int(bytes_accessed)),
        compiler_params=pltpu.CompilerParams(vmem_limit_bytes=16 * 1024 * 1024),
    )(*args)
    # score = score.view(score.size(0))
    return score.reshape(B)


# ------------------------------ param init --------------------------------- #
def init_critic_params(key, in_ch=_IN_CH):
    k1, k2, k3, k4, k5, k6 = jax.random.split(key, 6)
    def conv_w(k, co, ci, kh, kw):
        fan_in = ci * kh * kw
        return jax.random.normal(k, (co, ci, kh, kw), jnp.float32) * (fan_in ** -0.5)
    return {
        "conv1_w": conv_w(k1, 16, in_ch, 4, 4),
        "conv1_b": jax.random.normal(k2, (16,), jnp.float32) * 0.01,
        "conv2_w": conv_w(k3, 32, 16, 4, 4),
        "conv2_b": jax.random.normal(k4, (32,), jnp.float32) * 0.01,
        "conv3_w": conv_w(k5, 1, 32, 4, 4),
        "conv3_b": jax.random.normal(k6, (1,), jnp.float32) * 0.01,
    }


# ------------------------------- reference --------------------------------- #
def _critic_reference(params, x_nchw):
    """Pure-JAX reference (lax conv) for a correctness check."""
    x = x_nchw.astype(jnp.float32)
    def conv(x, w, b, stride, pad, act):
        y = jax.lax.conv_general_dilated(
            x, w, window_strides=(stride, stride),
            padding=((pad, pad), (pad, pad)),
            dimension_numbers=("NCHW", "OIHW", "NCHW"))
        y = y + b.reshape(1, -1, 1, 1)
        if act is not None:
            y = jnp.where(y >= 0, y, act * y)
        return y
    x = conv(x, params["conv1_w"], params["conv1_b"], 2, 1, 0.2)
    x = conv(x, params["conv2_w"], params["conv2_b"], 2, 1, 0.2)
    x = conv(x, params["conv3_w"], params["conv3_b"], 1, 0, None)
    return x.reshape(x.shape[0])


if __name__ == "__main__":
    key = jax.random.PRNGKey(0)
    k_params, k_x = jax.random.split(key)
    params = init_critic_params(k_params, in_ch=_IN_CH)
    x = jax.random.normal(k_x, (2, _IN_CH, _IMG, _IMG), jnp.float32)   # NCHW

    prep = prepare_critic_params(params, batch=2)   # one-time repack, outside jit
    score = critic_forward(prep, x)
    score = jax.block_until_ready(score)

    ref = _critic_reference(params, x)
    assert score.shape == (2,), score.shape
    assert jnp.allclose(score, ref, atol=1e-4, rtol=1e-4), (score, ref)
    print("KERNEL_OK")
</pallas_src>

<mosaic_0001>
module attributes {stable_mosaic.version = 11 : i64} {
  func.func @_critic_kernel(%arg0: memref<32x64xf32, #tpu.memory_space<vmem>>, %arg1: memref<4x16x32xf32, #tpu.memory_space<vmem>>, %arg2: memref<4x64x128xf32, #tpu.memory_space<vmem>>, %arg3: memref<1x128xf32, #tpu.memory_space<vmem>>, %arg4: memref<4x8x16xf32, #tpu.memory_space<vmem>>, %arg5: memref<4x128x128xf32, #tpu.memory_space<vmem>>, %arg6: memref<1x128xf32, #tpu.memory_space<vmem>>, %arg7: memref<8x128xf32, #tpu.memory_space<vmem>>, %arg8: memref<2x8xf32, #tpu.memory_space<vmem>>, %arg9: memref<1x1xf32, #tpu.memory_space<vmem>>, %arg10: memref<2x1xf32, #tpu.memory_space<vmem>>) attributes {dimension_semantics = [], scalar_prefetch = 0 : i64, scratch_operands = 0 : i64, tpu.core_type = #tpu.core_type<tc>} {
    %c0 = arith.constant 0 : index
    %c0_0 = arith.constant 0 : index
    %0 = vector.load %arg0[%c0, %c0_0] : memref<32x64xf32, #tpu.memory_space<vmem>>, vector<32x64xf32>
    %cst = arith.constant 0.000000e+00 : f32
    %1 = vector.broadcast %cst : f32 to vector<16x128xf32>
    %c0_1 = arith.constant 0 : index
    %c0_2 = arith.constant 0 : index
    %c0_3 = arith.constant 0 : index
    %2 = vector.load %arg1[%c0_1, %c0_2, %c0_3] : memref<4x16x32xf32, #tpu.memory_space<vmem>>, vector<1x16x32xf32>
    %3 = vector.shape_cast %2 : vector<1x16x32xf32> to vector<16x32xf32>
    %cst_4 = arith.constant dense<0.000000e+00> : vector<16x64xf32>
    %4 = tpu.matmul %3, %0, %cst_4 {dimension_numbers = #tpu.dot_dimension_numbers<[1], [0], [0], [1], [0, 0, 1, 1], [], []>} : vector<16x32xf32>, vector<32x64xf32>, vector<16x64xf32> -> vector<16x64xf32>
    %c0_5 = arith.constant 0 : index
    %c0_6 = arith.constant 0 : index
    %c0_7 = arith.constant 0 : index
    %5 = vector.load %arg2[%c0_5, %c0_6, %c0_7] : memref<4x64x128xf32, #tpu.memory_space<vmem>>, vector<1x64x128xf32>
    %6 = vector.shape_cast %5 : vector<1x64x128xf32> to vector<64x128xf32>
    %cst_8 = arith.constant dense<0.000000e+00> : vector<16x128xf32>
    %7 = tpu.matmul %4, %6, %cst_8 {dimension_numbers = #tpu.dot_dimension_numbers<[1], [0], [0], [1], [0, 0, 1, 1], [], []>} : vector<16x64xf32>, vector<64x128xf32>, vector<16x128xf32> -> vector<16x128xf32>
    %8 = arith.addf %1, %7 : vector<16x128xf32>
    %c1 = arith.constant 1 : index
    %c0_9 = arith.constant 0 : index
    %c0_10 = arith.constant 0 : index
    %9 = vector.load %arg1[%c1, %c0_9, %c0_10] : memref<4x16x32xf32, #tpu.memory_space<vmem>>, vector<1x16x32xf32>
    %10 = vector.shape_cast %9 : vector<1x16x32xf32> to vector<16x32xf32>
    %cst_11 = arith.constant dense<0.000000e+00> : vector<16x64xf32>
    %11 = tpu.matmul %10, %0, %cst_11 {dimension_numbers = #tpu.dot_dimension_numbers<[1], [0], [0], [1], [0, 0, 1, 1], [], []>} : vector<16x32xf32>, vector<32x64xf32>, vector<16x64xf32> -> vector<16x64xf32>
    %c1_12 = arith.constant 1 : index
    %c0_13 = arith.constant 0 : index
    %c0_14 = arith.constant 0 : index
    %12 = vector.load %arg2[%c1_12, %c0_13, %c0_14] : memref<4x64x128xf32, #tpu.memory_space<vmem>>, vector<1x64x128xf32>
    %13 = vector.shape_cast %12 : vector<1x64x128xf32> to vector<64x128xf32>
    %cst_15 = arith.constant dense<0.000000e+00> : vector<16x128xf32>
    %14 = tpu.matmul %11, %13, %cst_15 {dimension_numbers = #tpu.dot_dimension_numbers<[1], [0], [0], [1], [0, 0, 1, 1], [], []>} : vector<16x64xf32>, vector<64x128xf32>, vector<16x128xf32> -> vector<16x128xf32>
    %15 = arith.addf %8, %14 : vector<16x128xf32>
    %c2 = arith.constant 2 : index
    %c0_16 = arith.constant 0 : index
    %c0_17 = arith.constant 0 : index
    %16 = vector.load %arg1[%c2, %c0_16, %c0_17] : memref<4x16x32xf32, #tpu.memory_space<vmem>>, vector<1x16x32xf32>
    %17 = vector.shape_cast %16 : vector<1x16x32xf32> to vector<16x32xf32>
    %cst_18 = arith.constant dense<0.000000e+00> : vector<16x64xf32>
    %18 = tpu.matmul %17, %0, %cst_18 {dimension_numbers = #tpu.dot_dimension_numbers<[1], [0], [0], [1], [0, 0, 1, 1], [], []>} : vector<16x32xf32>, vector<32x64xf32>, vector<16x64xf32> -> vector<16x64xf32>
    %c2_19 = arith.constant 2 : index
    %c0_20 = arith.constant 0 : index
    %c0_21 = arith.constant 0 : index
    %19 = vector.load %arg2[%c2_19, %c0_20, %c0_21] : memref<4x64x128xf32, #tpu.memory_space<vmem>>, vector<1x64x128xf32>
    %20 = vector.shape_cast %19 : vector<1x64x128xf32> to vector<64x128xf32>
    %cst_22 = arith.constant dense<0.000000e+00> : vector<16x128xf32>
    %21 = tpu.matmul %18, %20, %cst_22 {dimension_numbers = #tpu.dot_dimension_numbers<[1], [0], [0], [1], [0, 0, 1, 1], [], []>} : vector<16x64xf32>, vector<64x128xf32>, vector<16x128xf32> -> vector<16x128xf32>
    %22 = arith.addf %15, %21 : vector<16x128xf32>
    %c3 = arith.constant 3 : index
    %c0_23 = arith.constant 0 : index
    %c0_24 = arith.constant 0 : index
    %23 = vector.load %arg1[%c3, %c0_23, %c0_24] : memref<4x16x32xf32, #tpu.memory_space<vmem>>, vector<1x16x32xf32>
    %24 = vector.shape_cast %23 : vector<1x16x32xf32> to vector<16x32xf32>
    %cst_25 = arith.constant dense<0.000000e+00> : vector<16x64xf32>
    %25 = tpu.matmul %24, %0, %cst_25 {dimension_numbers = #tpu.dot_dimension_numbers<[1], [0], [0], [1], [0, 0, 1, 1], [], []>} : vector<16x32xf32>, vector<32x64xf32>, vector<16x64xf32> -> vector<16x64xf32>
    %c3_26 = arith.constant 3 : index
    %c0_27 = arith.constant 0 : index
    %c0_28 = arith.constant 0 : index
    %26 = vector.load %arg2[%c3_26, %c0_27, %c0_28] : memref<4x64x128xf32, #tpu.memory_space<vmem>>, vector<1x64x128xf32>
    %27 = vector.shape_cast %26 : vector<1x64x128xf32> to vector<64x128xf32>
    %cst_29 = arith.constant dense<0.000000e+00> : vector<16x128xf32>
    %28 = tpu.matmul %25, %27, %cst_29 {dimension_numbers = #tpu.dot_dimension_numbers<[1], [0], [0], [1], [0, 0, 1, 1], [], []>} : vector<16x64xf32>, vector<64x128xf32>, vector<16x128xf32> -> vector<16x128xf32>
    %29 = arith.addf %22, %28 : vector<16x128xf32>
    %c0_30 = arith.constant 0 : index
    %c0_31 = arith.constant 0 : index
    %30 = vector.load %arg3[%c0_30, %c0_31] : memref<1x128xf32, #tpu.memory_space<vmem>>, vector<1x128xf32>
    %31 = vector.broadcast %30 : vector<1x128xf32> to vector<16x128xf32>
    %32 = arith.addf %29, %31 : vector<16x128xf32>
    %cst_32 = arith.constant 0.000000e+00 : f32
    %33 = vector.broadcast %cst_32 : f32 to vector<16x128xf32>
    %34 = arith.cmpf oge, %32, %33 : vector<16x128xf32>
    %cst_33 = arith.constant 2.000000e-01 : f32
    %35 = vector.broadcast %cst_33 : f32 to vector<16x128xf32>
    %36 = arith.mulf %35, %32 : vector<16x128xf32>
    %37 = arith.select %34, %32, %36 : vector<16x128xi1>, vector<16x128xf32>
    %cst_34 = arith.constant 0.000000e+00 : f32
    %38 = vector.broadcast %cst_34 : f32 to vector<8x128xf32>
    %c0_35 = arith.constant 0 : index
    %c0_36 = arith.constant 0 : index
    %c0_37 = arith.constant 0 : index
    %39 = vector.load %arg4[%c0_35, %c0_36, %c0_37] : memref<4x8x16xf32, #tpu.memory_space<vmem>>, vector<1x8x16xf32>
    %40 = vector.shape_cast %39 : vector<1x8x16xf32> to vector<8x16xf32>
    %cst_38 = arith.constant dense<0.000000e+00> : vector<8x128xf32>
    %41 = tpu.matmul %40, %37, %cst_38 {dimension_numbers = #tpu.dot_dimension_numbers<[1], [0], [0], [1], [0, 0, 1, 1], [], []>} : vector<8x16xf32>, vector<16x128xf32>, vector<8x128xf32> -> vector<8x128xf32>
    %c0_39 = arith.constant 0 : index
    %c0_40 = arith.constant 0 : index
    %c0_41 = arith.constant 0 : index
    %42 = vector.load %arg5[%c0_39, %c0_40, %c0_41] : memref<4x128x128xf32, #tpu.memory_space<vmem>>, vector<1x128x128xf32>
    %43 = vector.shape_cast %42 : vector<1x128x128xf32> to vector<128x128xf32>
    %cst_42 = arith.constant dense<0.000000e+00> : vector<8x128xf32>
    %44 = tpu.matmul %41, %43, %cst_42 {dimension_numbers = #tpu.dot_dimension_numbers<[1], [0], [0], [1], [0, 0, 1, 1], [], []>} : vector<8x128xf32>, vector<128x128xf32>, vector<8x128xf32> -> vector<8x128xf32>
    %45 = arith.addf %38, %44 : vector<8x128xf32>
    %c1_43 = arith.constant 1 : index
    %c0_44 = arith.constant 0 : index
    %c0_45 = arith.constant 0 : index
    %46 = vector.load %arg4[%c1_43, %c0_44, %c0_45] : memref<4x8x16xf32, #tpu.memory_space<vmem>>, vector<1x8x16xf32>
    %47 = vector.shape_cast %46 : vector<1x8x16xf32> to vector<8x16xf32>
    %cst_46 = arith.constant dense<0.000000e+00> : vector<8x128xf32>
    %48 = tpu.matmul %47, %37, %cst_46 {dimension_numbers = #tpu.dot_dimension_numbers<[1], [0], [0], [1], [0, 0, 1, 1], [], []>} : vector<8x16xf32>, vector<16x128xf32>, vector<8x128xf32> -> vector<8x128xf32>
    %c1_47 = arith.constant 1 : index
    %c0_48 = arith.constant 0 : index
    %c0_49 = arith.constant 0 : index
    %49 = vector.load %arg5[%c1_47, %c0_48, %c0_49] : memref<4x128x128xf32, #tpu.memory_space<vmem>>, vector<1x128x128xf32>
    %50 = vector.shape_cast %49 : vector<1x128x128xf32> to vector<128x128xf32>
    %cst_50 = arith.constant dense<0.000000e+00> : vector<8x128xf32>
    %51 = tpu.matmul %48, %50, %cst_50 {dimension_numbers = #tpu.dot_dimension_numbers<[1], [0], [0], [1], [0, 0, 1, 1], [], []>} : vector<8x128xf32>, vector<128x128xf32>, vector<8x128xf32> -> vector<8x128xf32>
    %52 = arith.addf %45, %51 : vector<8x128xf32>
    %c2_51 = arith.constant 2 : index
    %c0_52 = arith.constant 0 : index
    %c0_53 = arith.constant 0 : index
    %53 = vector.load %arg4[%c2_51, %c0_52, %c0_53] : memref<4x8x16xf32, #tpu.memory_space<vmem>>, vector<1x8x16xf32>
    %54 = vector.shape_cast %53 : vector<1x8x16xf32> to vector<8x16xf32>
    %cst_54 = arith.constant dense<0.000000e+00> : vector<8x128xf32>
    %55 = tpu.matmul %54, %37, %cst_54 {dimension_numbers = #tpu.dot_dimension_numbers<[1], [0], [0], [1], [0, 0, 1, 1], [], []>} : vector<8x16xf32>, vector<16x128xf32>, vector<8x128xf32> -> vector<8x128xf32>
    %c2_55 = arith.constant 2 : index
    %c0_56 = arith.constant 0 : index
    %c0_57 = arith.constant 0 : index
    %56 = vector.load %arg5[%c2_55, %c0_56, %c0_57] : memref<4x128x128xf32, #tpu.memory_space<vmem>>, vector<1x128x128xf32>
    %57 = vector.shape_cast %56 : vector<1x128x128xf32> to vector<128x128xf32>
    %cst_58 = arith.constant dense<0.000000e+00> : vector<8x128xf32>
    %58 = tpu.matmul %55, %57, %cst_58 {dimension_numbers = #tpu.dot_dimension_numbers<[1], [0], [0], [1], [0, 0, 1, 1], [], []>} : vector<8x128xf32>, vector<128x128xf32>, vector<8x128xf32> -> vector<8x128xf32>
    %59 = arith.addf %52, %58 : vector<8x128xf32>
    %c3_59 = arith.constant 3 : index
    %c0_60 = arith.constant 0 : index
    %c0_61 = arith.constant 0 : index
    %60 = vector.load %arg4[%c3_59, %c0_60, %c0_61] : memref<4x8x16xf32, #tpu.memory_space<vmem>>, vector<1x8x16xf32>
    %61 = vector.shape_cast %60 : vector<1x8x16xf32> to vector<8x16xf32>
    %cst_62 = arith.constant dense<0.000000e+00> : vector<8x128xf32>
    %62 = tpu.matmul %61, %37, %cst_62 {dimension_numbers = #tpu.dot_dimension_numbers<[1], [0], [0], [1], [0, 0, 1, 1], [], []>} : vector<8x16xf32>, vector<16x128xf32>, vector<8x128xf32> -> vector<8x128xf32>
    %c3_63 = arith.constant 3 : index
    %c0_64 = arith.constant 0 : index
    %c0_65 = arith.constant 0 : index
    %63 = vector.load %arg5[%c3_63, %c0_64, %c0_65] : memref<4x128x128xf32, #tpu.memory_space<vmem>>, vector<1x128x128xf32>
    %64 = vector.shape_cast %63 : vector<1x128x128xf32> to vector<128x128xf32>
    %cst_66 = arith.constant dense<0.000000e+00> : vector<8x128xf32>
    %65 = tpu.matmul %62, %64, %cst_66 {dimension_numbers = #tpu.dot_dimension_numbers<[1], [0], [0], [1], [0, 0, 1, 1], [], []>} : vector<8x128xf32>, vector<128x128xf32>, vector<8x128xf32> -> vector<8x128xf32>
    %66 = arith.addf %59, %65 : vector<8x128xf32>
    %c0_67 = arith.constant 0 : index
    %c0_68 = arith.constant 0 : index
    %67 = vector.load %arg6[%c0_67, %c0_68] : memref<1x128xf32, #tpu.memory_space<vmem>>, vector<1x128xf32>
    %68 = vector.broadcast %67 : vector<1x128xf32> to vector<8x128xf32>
    %69 = arith.addf %66, %68 : vector<8x128xf32>
    %cst_69 = arith.constant 0.000000e+00 : f32
    %70 = vector.broadcast %cst_69 : f32 to vector<8x128xf32>
    %71 = arith.cmpf oge, %69, %70 : vector<8x128xf32>
    %cst_70 = arith.constant 2.000000e-01 : f32
    %72 = vector.broadcast %cst_70 : f32 to vector<8x128xf32>
    %73 = arith.mulf %72, %69 : vector<8x128xf32>
    %74 = arith.select %71, %69, %73 : vector<8x128xi1>, vector<8x128xf32>
    %c0_71 = arith.constant 0 : index
    %c0_72 = arith.constant 0 : index
    %75 = vector.load %arg7[%c0_71, %c0_72] : memref<8x128xf32, #tpu.memory_space<vmem>>, vector<8x128xf32>
    %76 = arith.mulf %74, %75 : vector<8x128xf32>
    %c0_73 = arith.constant 0 : index
    %c0_74 = arith.constant 0 : index
    %77 = vector.load %arg8[%c0_73, %c0_74] : memref<2x8xf32, #tpu.memory_space<vmem>>, vector<2x8xf32>
    %cst_75 = arith.constant dense<0.000000e+00> : vector<2x128xf32>
    %78 = tpu.matmul %77, %76, %cst_75 {dimension_numbers = #tpu.dot_dimension_numbers<[1], [0], [0], [1], [0, 0, 1, 1], [], []>} : vector<2x8xf32>, vector<8x128xf32>, vector<2x128xf32> -> vector<2x128xf32>
    %cst_76 = arith.constant dense<0.000000e+00> : vector<2xf32>
    %79 = vector.multi_reduction <add>, %78, %cst_76 [1] : vector<2x128xf32> to vector<2xf32>
    %80 = vector.shape_cast %79 : vector<2xf32> to vector<2x1xf32>
    %c0_77 = arith.constant 0 : index
    %c0_78 = arith.constant 0 : index
    %81 = vector.load %arg9[%c0_77, %c0_78] : memref<1x1xf32, #tpu.memory_space<vmem>>, vector<1x1xf32>
    %82 = vector.broadcast %81 : vector<1x1xf32> to vector<2x1xf32>
    %83 = arith.addf %80, %82 : vector<2x1xf32>
    %c0_79 = arith.constant 0 : index
    %c0_80 = arith.constant 0 : index
    %84 = vector.load %arg10[%c0_79, %c0_80] : memref<2x1xf32, #tpu.memory_space<vmem>>, vector<2x1xf32>
    tpu.vector_store %arg10[%c0_79, %c0_80], %83 {strides = array<i32>} : memref<2x1xf32, #tpu.memory_space<vmem>>, vector<2x1xf32>,
    return
  }
}

</mosaic_0001>

<llo_original>
// kernel: critic_forward.1
$region0: #{critic_forward.1}
  #allocation0 [shape = 'u32[]', space=smem, size = 0x4, offset = 0x4, fixed_abs, tag = 'smem constant byte address 0x4 - core index']
  #allocation1 [shape = 'u32[144,128]{1,0:T(1,128)}', space=vmem, size = 0x12000, scoped, tag = 'internal scratch']
  #allocation2 [shape = 'f32[1,1]{1,0:T(1,128)S(1)}', space=vmem, size = 0x200, scoped, tag = 'scoped memory for critic_forward.1']
  %s0 = inlined_call_operand.vmem [shape: f32[32,64], index: 0, kind: input, shape index: {}]
  %s1 = inlined_call_operand.hbm [shape: f32[4,16,32], index: 1, kind: input, shape index: {}]
  %s2 = inlined_call_operand.hbm [shape: f32[4,64,128], index: 2, kind: input, shape index: {}]
  %s3 = inlined_call_operand.vmem [shape: f32[1,128], index: 3, kind: input, shape index: {}]
  %s4 = inlined_call_operand.vmem [shape: f32[4,8,16], index: 4, kind: input, shape index: {}]
  %s5 = inlined_call_operand.vmem [shape: f32[4,128,128], index: 5, kind: input, shape index: {}]
  %s6 = inlined_call_operand.vmem [shape: f32[1,128], index: 6, kind: input, shape index: {}]
  %s7 = inlined_call_operand.vmem [shape: f32[8,128], index: 7, kind: input, shape index: {}]
  %s8 = inlined_call_operand.vmem [shape: f32[2,8], index: 8, kind: input, shape index: {}]
  %s9 = inlined_call_operand.<no memory space> [shape: f32[1,1], index: 9, kind: input, shape index: {}]
  %s10 = inlined_call_operand.vmem [shape: f32[2,1], index: 10, kind: output, shape index: {}]
  %s11 = sld [smem:[#allocation0]]
  $region58: #{critic_forward.1} parent=0
    _
  %s13 = ssub.s32 1, %s11
  %s14 = scalar_select 0, %s13, %s11
  %v15 = vstv %s9
  %16 = vst [vmem:[#allocation2] sm:$0x1] %v15
  $region1: #{critic_forward.1} parent=0
    #allocation3 [shape = 'u8[32768]{0}', space=vmem, size = 0x8000, scoped, tag = 'input window, operand 1, single buffered']
    #allocation4 [shape = 's32[1]{0}', space=sflag, size = 0x4, scoped, tag = 'scoped memory for critic_forward.1']
    #allocation5 [shape = 'u8[131072]{0}', space=vmem, size = 0x20000, scoped, tag = 'input window, operand 2, single buffered']
    #allocation6 [shape = 's32[1]{0}', space=sflag, size = 0x4, scoped, tag = 'scoped memory for critic_forward.1']
    %17 = vsyncpa [#allocation4], 0
    %18 = vsyncpa [#allocation6], 0
    // Predicated region
    $region2: #{critic_forward.1} parent=1 // pred_check
      _
    $region3: #{critic_forward.1} parent=1 // pred_check_branch
      %20 = sbr.rel (0) target = $region5
    $region4: #{critic_forward.1} parent=1 // pred_region
      _
    $region5: #{critic_forward.1} parent=1 // pred_fallthru
      _
    // Predicated region
    $region6: #{critic_forward.1} parent=1 // pred_check
      _
    $region7: #{critic_forward.1} parent=1 // pred_check_branch
      %22 = sbr.rel (0) target = $region9
    $region8: #{critic_forward.1} parent=1 // pred_region
      %s24 = ssub.s32 1024, 1024
      %25 = vsyncadd [#allocation4], %s24
      %s26 = sshll.u32 [#allocation3], 4
      %s27 = int_to_ptr.vmem [resolvable:$true] %s26
      %32 = dma.hbm_to_vmem [thread:$0]  %s1, 1024, %s27, [#allocation4], 128, 128, 8
    $region9: #{critic_forward.1} parent=1 // pred_fallthru
      _
    // Predicated region
    $region10: #{critic_forward.1} parent=1 // pred_check
      _
    $region11: #{critic_forward.1} parent=1 // pred_check_branch
      %34 = sbr.rel (0) target = $region13
    $region12: #{critic_forward.1} parent=1 // pred_region
      %s36 = ssub.s32 4096, 4096
      %37 = vsyncadd [#allocation6], %s36
      %s38 = sshll.u32 [#allocation5], 4
      %s39 = int_to_ptr.vmem [resolvable:$true] %s38
      %44 = dma.hbm_to_vmem [thread:$0]  %s2, 4096, %s39, [#allocation6], 128, 128, 8
    $region13: #{critic_forward.1} parent=1 // pred_fallthru
      _
    // Predicated region
    $region14: #{critic_forward.1} parent=1 // pred_check
      _
    $region15: #{critic_forward.1} parent=1 // pred_check_branch
      %46 = sbr.rel (0) target = $region17
    $region16: #{critic_forward.1} parent=1 // pred_region
      _
    $region17: #{critic_forward.1} parent=1 // pred_fallthru
      _
    // Predicated region
    $region18: #{critic_forward.1} parent=1 // pred_check
      _
    $region19: #{critic_forward.1} parent=1 // pred_check_branch
      %48 = sbr.rel (0) target = $region21
    $region20: #{critic_forward.1} parent=1 // pred_region
      _
    $region21: #{critic_forward.1} parent=1 // pred_fallthru
      _
    // Predicated region
    $region22: #{critic_forward.1} parent=1 // pred_check
      _
    $region23: #{critic_forward.1} parent=1 // pred_check_branch
      %50 = sbr.rel (0) target = $region25
    $region24: #{critic_forward.1} parent=1 // pred_region
      _
    $region25: #{critic_forward.1} parent=1 // pred_fallthru
      _
    // Predicated region
    $region26: #{critic_forward.1} parent=1 // pred_check
      _
    $region27: #{critic_forward.1} parent=1 // pred_check_branch
      %52 = sbr.rel (0) target = $region29
    $region28: #{critic_forward.1} parent=1 // pred_region
      _
    $region29: #{critic_forward.1} parent=1 // pred_fallthru
      _
    // Predicated region
    $region30: #{critic_forward.1} parent=1 // pred_check
      _
    $region31: #{critic_forward.1} parent=1 // pred_check_branch
      %54 = sbr.rel (0) target = $region33
    $region32: #{critic_forward.1} parent=1 // pred_region
      _
    $region33: #{critic_forward.1} parent=1 // pred_fallthru
      _
    // Predicated region
    $region34: #{critic_forward.1} parent=1 // pred_check
      _
    $region35: #{critic_forward.1} parent=1 // pred_check_branch
      %56 = sbr.rel (0) target = $region37
    $region36: #{critic_forward.1} parent=1 // pred_region
      _
    $region37: #{critic_forward.1} parent=1 // pred_fallthru
      _
    // Predicated region
    $region38: #{critic_forward.1} parent=1 // pred_check
      _
    $region39: #{critic_forward.1} parent=1 // pred_check_branch
      %58 = sbr.rel (0) target = $region41
    $region40: #{critic_forward.1} parent=1 // pred_region
      _
    $region41: #{critic_forward.1} parent=1 // pred_fallthru
      _
    // Predicated region
    $region42: #{critic_forward.1} parent=1 // pred_check
      _
    $region43: #{critic_forward.1} parent=1 // pred_check_branch
      %60 = sbr.rel (0) target = $region45
    $region44: #{critic_forward.1} parent=1 // pred_region
      %61 = dma.done [#allocation4], 1024
    $region45: #{critic_forward.1} parent=1 // pred_fallthru
      _
    // Predicated region
    $region46: #{critic_forward.1} parent=1 // pred_check
      _
    $region47: #{critic_forward.1} parent=1 // pred_check_branch
      %63 = sbr.rel (0) target = $region49
    $region48: #{critic_forward.1} parent=1 // pred_region
      %64 = dma.done [#allocation6], 4096
    $region49: #{critic_forward.1} parent=1 // pred_fallthru
      _
    %v65 = vld [vmem:[%s0] sm:$0xff]
    %v66 = vld [vmem:[%s0 + $0x8] sm:$0xff]
    %v67 = vld [vmem:[%s0 + $0x10] sm:$0xff]
    %v68 = vld [vmem:[%s0 + $0x18] sm:$0xff]
    %v69 = vld [vmem:[#allocation3] sm:$0xff]
    %v70 = vld [vmem:[#allocation3 + $0x8] sm:$0xff]
    %vm71 = vcmask 261120
    %v73 = vsel %vm71, %v69, 0
    %v76 = vsel %vm71, %v70, 0
    %78 = vmatprep.subr.mxu0 0.0
    %79 = vmatpush1.msra.mxu0 %v65
    %80 = vmatprep.subr.mxu0 0.0
    %81 = vmatpush1.msra.mxu0 %v66
    %82 = vmatprep.subr.mxu0 0.0
    %83 = vmatpush1.msra.mxu0 %v67
    %84 = vmatprep.subr.mxu0 0.0
    %85 = vmatpush1.msra.mxu0 %v68
    %86 = vmatprep.subr.mxu0 0.0
    %87 = vmatpush1.msra.mxu0 0.0
    %88 = vmatprep.subr.mxu0 0.0
    %89 = vmatpush1.msra.mxu0 0.0
    %90 = vmatprep.subr.mxu0 0.0
    %91 = vmatpush1.msra.mxu0 0.0
    %92 = vmatprep.subr.mxu0 0.0
    %93 = vmatpush1.msra.mxu0 0.0
    %94 = vmatprep.subr.mxu0 0.0
    %95 = vmatpush1.msra.mxu0 0.0
    %96 = vmatprep.subr.mxu0 0.0
    %97 = vmatpush1.msra.mxu0 0.0
    %98 = vmatprep.subr.mxu0 0.0
    %99 = vmatpush1.msra.mxu0 0.0
    %100 = vmatprep.subr.mxu0 0.0
    %101 = vmatpush1.msra.mxu0 0.0
    %102 = vmatprep.subr.mxu0 0.0
    %103 = vmatpush1.msra.mxu0 0.0
    %104 = vmatprep.subr.mxu0 0.0
    %105 = vmatpush1.msra.mxu0 0.0
    %106 = vmatprep.subr.mxu0 0.0
    %107 = vmatpush1.msra.mxu0 0.0
    %108 = vmatprep.subr.mxu0 0.0
    %109 = vmatpush1.msra.mxu0 0.0
    %110 = vmatprep.subr.mxu0 0.0
    %111 = vmatpush1.msra.mxu0 0.0
    %112 = vmatprep.subr.mxu0 0.0
    %113 = vmatpush1.msra.mxu0 0.0
    %114 = vmatprep.subr.mxu0 0.0
    %115 = vmatpush1.msra.mxu0 0.0
    %116 = vmatprep.subr.mxu0 0.0
    %117 = vmatpush1.msra.mxu0 0.0
    %118 = vmatprep.subr.mxu0 0.0
    %119 = vmatpush1.msra.mxu0 0.0
    %120 = vmatprep.subr.mxu0 0.0
    %121 = vmatpush1.msra.mxu0 0.0
    %122 = vmatprep.subr.mxu0 0.0
    %123 = vmatpush1.msra.mxu0 0.0
    %124 = vmatprep.subr.mxu0 0.0
    %125 = vmatpush1.msra.mxu0 0.0
    %126 = vmatprep.subr.mxu0 0.0
    %127 = vmatpush1.msra.mxu0 0.0
    %128 = vmatprep.subr.mxu0 0.0
    %129 = vmatpush1.msra.mxu0 0.0
    %130 = vmatprep.subr.mxu0 0.0
    %131 = vmatpush1.msra.mxu0 0.0
    %132 = vmatprep.subr.mxu0 0.0
    %133 = vmatpush1.msra.mxu0 0.0
    %134 = vmatprep.subr.mxu0 0.0
    %135 = vmatpush1.msra.mxu0 0.0
    %136 = vmatprep.subr.mxu0 0.0
    %137 = vmatpush1.msra.mxu0 0.0
    %138 = vmatprep.subr.mxu0 0.0
    %139 = vmatpush1.msra.mxu0 0.0
    %140 = vmatprep.subr.mxu0 0.0
    %141 = vmatpush1.msra.mxu0 0.0
    %142 = vmatprep.mubr.f32.mxu0 0.0
    %143 = vmatmul.mubr.f32.gmra.mrb[0].mxu0 %v73
    %v144 = vpop.f32.mrb[0].mxu0
    %v145 = vadd.f32 0.0, %v144
    %v146 = vpop.f32.mrb[0].mxu0
    %147 = vmatprep.mubr.f32.mxu0 0.0
    %148 = vmatmul.mubr.f32.gmra.mrb[0].mxu0 %v76
    %v149 = vpop.f32.mrb[0].mxu0
    %v150 = vadd.f32 0.0, %v149
    %v151 = vpop.f32.mrb[0].mxu0
    %152 = vdwg.mxu0
    %v153 = vld [vmem:[#allocation5] sm:$0xff]
    %v154 = vld [vmem:[#allocation5 + $0x8] sm:$0xff]
    %v155 = vld [vmem:[#allocation5 + $0x10] sm:$0xff]
    %v156 = vld [vmem:[#allocation5 + $0x18] sm:$0xff]
    %v157 = vld [vmem:[#allocation5 + $0x20] sm:$0xff]
    %v158 = vld [vmem:[#allocation5 + $0x28] sm:$0xff]
    %v159 = vld [vmem:[#allocation5 + $0x30] sm:$0xff]
    %v160 = vld [vmem:[#allocation5 + $0x38] sm:$0xff]
    %s161 = scalar_lea.vmem [#allocation3], 16
    %v162 = vld [vmem:[%s161] sm:$0xff]
    %v163 = vld [vmem:[%s161 + $0x8] sm:$0xff]
    %v165 = vsel %vm71, %v162, 0
    %v168 = vsel %vm71, %v163, 0
    %170 = vmatprep.subr.mxu0 0.0
    %171 = vmatpush1.msra.mxu0 %v65
    %172 = vmatprep.subr.mxu0 0.0
    %173 = vmatpush1.msra.mxu0 %v66
    %174 = vmatprep.subr.mxu0 0.0
    %175 = vmatpush1.msra.mxu0 %v67
    %176 = vmatprep.subr.mxu0 0.0
    %177 = vmatpush1.msra.mxu0 %v68
    %178 = vmatprep.subr.mxu0 0.0
    %179 = vmatpush1.msra.mxu0 0.0
    %180 = vmatprep.subr.mxu0 0.0
    %181 = vmatpush1.msra.mxu0 0.0
    %182 = vmatprep.subr.mxu0 0.0
    %183 = vmatpush1.msra.mxu0 0.0
    %184 = vmatprep.subr.mxu0 0.0
    %185 = vmatpush1.msra.mxu0 0.0
    %186 = vmatprep.subr.mxu0 0.0
    %187 = vmatpush1.msra.mxu0 0.0
    %188 = vmatprep.subr.mxu0 0.0
    %189 = vmatpush1.msra.mxu0 0.0
    %190 = vmatprep.subr.mxu0 0.0
    %191 = vmatpush1.msra.mxu0 0.0
    %192 = vmatprep.subr.mxu0 0.0
    %193 = vmatpush1.msra.mxu0 0.0
    %194 = vmatprep.subr.mxu0 0.0
    %195 = vmatpush1.msra.mxu0 0.0
    %196 = vmatprep.subr.mxu0 0.0
    %197 = vmatpush1.msra.mxu0 0.0
    %198 = vmatprep.subr.mxu0 0.0
    %199 = vmatpush1.msra.mxu0 0.0
    %200 = vmatprep.subr.mxu0 0.0
    %201 = vmatpush1.msra.mxu0 0.0
    %202 = vmatprep.subr.mxu0 0.0
    %203 = vmatpush1.msra.mxu0 0.0
    %204 = vmatprep.subr.mxu0 0.0
    %205 = vmatpush1.msra.mxu0 0.0
    %206 = vmatprep.subr.mxu0 0.0
    %207 = vmatpush1.msra.mxu0 0.0
    %208 = vmatprep.subr.mxu0 0.0
    %209 = vmatpush1.msra.mxu0 0.0
    %210 = vmatprep.subr.mxu0 0.0
    %211 = vmatpush1.msra.mxu0 0.0
    %212 = vmatprep.subr.mxu0 0.0
    %213 = vmatpush1.msra.mxu0 0.0
    %214 = vmatprep.subr.mxu0 0.0
    %215 = vmatpush1.msra.mxu0 0.0
    %216 = vmatprep.subr.mxu0 0.0
    %217 = vmatpush1.msra.mxu0 0.0
    %218 = vmatprep.subr.mxu0 0.0
    %219 = vmatpush1.msra.mxu0 0.0
    %220 = vmatprep.subr.mxu0 0.0
    %221 = vmatpush1.msra.mxu0 0.0
    %222 = vmatprep.subr.mxu0 0.0
    %223 = vmatpush1.msra.mxu0 0.0
    %224 = vmatprep.subr.mxu0 0.0
    %225 = vmatpush1.msra.mxu0 0.0
    %226 = vmatprep.subr.mxu0 0.0
    %227 = vmatpush1.msra.mxu0 0.0
    %228 = vmatprep.subr.mxu0 0.0
    %229 = vmatpush1.msra.mxu0 0.0
    %230 = vmatprep.subr.mxu0 0.0
    %231 = vmatpush1.msra.mxu0 0.0
    %232 = vmatprep.subr.mxu0 0.0
    %233 = vmatpush1.msra.mxu0 0.0
    %234 = vmatprep.mubr.f32.mxu0 0.0
    %235 = vmatmul.mubr.f32.gmra.mrb[0].mxu0 %v165
    %v236 = vpop.f32.mrb[0].mxu0
    %v237 = vadd.f32 0.0, %v236
    %v238 = vpop.f32.mrb[0].mxu0
    %239 = vmatprep.mubr.f32.mxu0 0.0
    %240 = vmatmul.mubr.f32.gmra.mrb[0].mxu0 %v168
    %v241 = vpop.f32.mrb[0].mxu0
    %v242 = vadd.f32 0.0, %v241
    %v243 = vpop.f32.mrb[0].mxu0
    %244 = vdwg.mxu0
    %s245 = scalar_lea.vmem [#allocation5], 64
    %v246 = vld [vmem:[%s245] sm:$0xff]
    %v247 = vld [vmem:[%s245 + $0x8] sm:$0xff]
    %v248 = vld [vmem:[%s245 + $0x10] sm:$0xff]
    %v249 = vld [vmem:[%s245 + $0x18] sm:$0xff]
    %v250 = vld [vmem:[%s245 + $0x20] sm:$0xff]
    %v251 = vld [vmem:[%s245 + $0x28] sm:$0xff]
    %v252 = vld [vmem:[%s245 + $0x30] sm:$0xff]
    %v253 = vld [vmem:[%s245 + $0x38] sm:$0xff]
    %vm254 = vcmask 523264
    %v256 = vsel %vm254, %v237, 0
    %v259 = vsel %vm254, %v242, 0
    %261 = vmatprep.subr.mxu0 0.0
    %262 = vmatpush1.msra.mxu0 %v246
    %263 = vmatprep.subr.mxu0 0.0
    %264 = vmatpush1.msra.mxu0 %v247
    %265 = vmatprep.subr.mxu0 0.0
    %266 = vmatpush1.msra.mxu0 %v248
    %267 = vmatprep.subr.mxu0 0.0
    %268 = vmatpush1.msra.mxu0 %v249
    %269 = vmatprep.subr.mxu0 0.0
    %270 = vmatpush1.msra.mxu0 %v250
    %271 = vmatprep.subr.mxu0 0.0
    %272 = vmatpush1.msra.mxu0 %v251
    %273 = vmatprep.subr.mxu0 0.0
    %274 = vmatpush1.msra.mxu0 %v252
    %275 = vmatprep.subr.mxu0 0.0
    %276 = vmatpush1.msra.mxu0 %v253
    %277 = vmatprep.subr.mxu0 0.0
    %278 = vmatpush1.msra.mxu0 0.0
    %279 = vmatprep.subr.mxu0 0.0
    %280 = vmatpush1.msra.mxu0 0.0
    %281 = vmatprep.subr.mxu0 0.0
    %282 = vmatpush1.msra.mxu0 0.0
    %283 = vmatprep.subr.mxu0 0.0
    %284 = vmatpush1.msra.mxu0 0.0
    %285 = vmatprep.subr.mxu0 0.0
    %286 = vmatpush1.msra.mxu0 0.0
    %287 = vmatprep.subr.mxu0 0.0
    %288 = vmatpush1.msra.mxu0 0.0
    %289 = vmatprep.subr.mxu0 0.0
    %290 = vmatpush1.msra.mxu0 0.0
    %291 = vmatprep.subr.mxu0 0.0
    %292 = vmatpush1.msra.mxu0 0.0
    %293 = vmatprep.subr.mxu0 0.0
    %294 = vmatpush1.msra.mxu0 0.0
    %295 = vmatprep.subr.mxu0 0.0
    %296 = vmatpush1.msra.mxu0 0.0
    %297 = vmatprep.subr.mxu0 0.0
    %298 = vmatpush1.msra.mxu0 0.0
    %299 = vmatprep.subr.mxu0 0.0
    %300 = vmatpush1.msra.mxu0 0.0
    %301 = vmatprep.subr.mxu0 0.0
    %302 = vmatpush1.msra.mxu0 0.0
    %303 = vmatprep.subr.mxu0 0.0
    %304 = vmatpush1.msra.mxu0 0.0
    %305 = vmatprep.subr.mxu0 0.0
    %306 = vmatpush1.msra.mxu0 0.0
    %307 = vmatprep.subr.mxu0 0.0
    %308 = vmatpush1.msra.mxu0 0.0
    %309 = vmatprep.subr.mxu0 0.0
    %310 = vmatpush1.msra.mxu0 0.0
    %311 = vmatprep.subr.mxu0 0.0
    %312 = vmatpush1.msra.mxu0 0.0
    %313 = vmatprep.subr.mxu0 0.0
    %314 = vmatpush1.msra.mxu0 0.0
    %315 = vmatprep.subr.mxu0 0.0
    %316 = vmatpush1.msra.mxu0 0.0
    %317 = vmatprep.subr.mxu0 0.0
    %318 = vmatpush1.msra.mxu0 0.0
    %319 = vmatprep.subr.mxu0 0.0
    %320 = vmatpush1.msra.mxu0 0.0
    %321 = vmatprep.subr.mxu0 0.0
    %322 = vmatpush1.msra.mxu0 0.0
    %323 = vmatprep.subr.mxu0 0.0
    %324 = vmatpush1.msra.mxu0 0.0
    %325 = vmatprep.mubr.f32.mxu0 0.0
    %326 = vmatmul.mubr.f32.gmra.mrb[0].mxu0 %v256
    %v327 = vpop.f32.mrb[0].mxu0
    %v328 = vadd.f32 0.0, %v327
    %v329 = vpop.f32.mrb[0].mxu0
    %330 = vmatprep.mubr.f32.mxu0 0.0
    %331 = vmatmul.mubr.f32.gmra.mrb[0].mxu0 %v259
    %v332 = vpop.f32.mrb[0].mxu0
    %v333 = vadd.f32 0.0, %v332
    %v334 = vpop.f32.mrb[0].mxu0
    %335 = vdwg.mxu0
    %v337 = vsel %vm254, %v145, 0
    %v340 = vsel %vm254, %v150, 0
    %342 = vmatprep.subr.mxu0 0.0
    %343 = vmatpush1.msra.mxu0 %v153
    %344 = vmatprep.subr.mxu0 0.0
    %345 = vmatpush1.msra.mxu0 %v154
    %346 = vmatprep.subr.mxu0 0.0
    %347 = vmatpush1.msra.mxu0 %v155
    %348 = vmatprep.subr.mxu0 0.0
    %349 = vmatpush1.msra.mxu0 %v156
    %350 = vmatprep.subr.mxu0 0.0
    %351 = vmatpush1.msra.mxu0 %v157
    %352 = vmatprep.subr.mxu0 0.0
    %353 = vmatpush1.msra.mxu0 %v158
    %354 = vmatprep.subr.mxu0 0.0
    %355 = vmatpush1.msra.mxu0 %v159
    %356 = vmatprep.subr.mxu0 0.0
    %357 = vmatpush1.msra.mxu0 %v160
    %358 = vmatprep.subr.mxu0 0.0
    %359 = vmatpush1.msra.mxu0 0.0
    %360 = vmatprep.subr.mxu0 0.0
    %361 = vmatpush1.msra.mxu0 0.0
    %362 = vmatprep.subr.mxu0 0.0
    %363 = vmatpush1.msra.mxu0 0.0
    %364 = vmatprep.subr.mxu0 0.0
    %365 = vmatpush1.msra.mxu0 0.0
    %366 = vmatprep.subr.mxu0 0.0
    %367 = vmatpush1.msra.mxu0 0.0
    %368 = vmatprep.subr.mxu0 0.0
    %369 = vmatpush1.msra.mxu0 0.0
    %370 = vmatprep.subr.mxu0 0.0
    %371 = vmatpush1.msra.mxu0 0.0
    %372 = vmatprep.subr.mxu0 0.0
    %373 = vmatpush1.msra.mxu0 0.0
    %374 = vmatprep.subr.mxu0 0.0
    %375 = vmatpush1.msra.mxu0 0.0
    %376 = vmatprep.subr.mxu0 0.0
    %377 = vmatpush1.msra.mxu0 0.0
    %378 = vmatprep.subr.mxu0 0.0
    %379 = vmatpush1.msra.mxu0 0.0
    %380 = vmatprep.subr.mxu0 0.0
    %381 = vmatpush1.msra.mxu0 0.0
    %382 = vmatprep.subr.mxu0 0.0
    %383 = vmatpush1.msra.mxu0 0.0
    %384 = vmatprep.subr.mxu0 0.0
    %385 = vmatpush1.msra.mxu0 0.0
    %386 = vmatprep.subr.mxu0 0.0
    %387 = vmatpush1.msra.mxu0 0.0
    %388 = vmatprep.subr.mxu0 0.0
    %389 = vmatpush1.msra.mxu0 0.0
    %390 = vmatprep.subr.mxu0 0.0
    %391 = vmatpush1.msra.mxu0 0.0
    %392 = vmatprep.subr.mxu0 0.0
    %393 = vmatpush1.msra.mxu0 0.0
    %394 = vmatprep.subr.mxu0 0.0
    %395 = vmatpush1.msra.mxu0 0.0
    %396 = vmatprep.subr.mxu0 0.0
    %397 = vmatpush1.msra.mxu0 0.0
    %398 = vmatprep.subr.mxu0 0.0
    %399 = vmatpush1.msra.mxu0 0.0
    %400 = vmatprep.subr.mxu0 0.0
    %401 = vmatpush1.msra.mxu0 0.0
    %402 = vmatprep.subr.mxu0 0.0
    %403 = vmatpush1.msra.mxu0 0.0
    %404 = vmatprep.subr.mxu0 0.0
    %405 = vmatpush1.msra.mxu0 0.0
    %406 = vmatprep.mubr.f32.mxu0 0.0
    %407 = vmatmul.mubr.f32.gmra.mrb[0].mxu0 %v337
    %v408 = vpop.f32.mrb[0].mxu0
    %v409 = vadd.f32 %v328, %v408
    %v410 = vpop.f32.mrb[0].mxu0
    %411 = vmatprep.mubr.f32.mxu0 0.0
    %412 = vmatmul.mubr.f32.gmra.mrb[0].mxu0 %v340
    %v413 = vpop.f32.mrb[0].mxu0
    %v414 = vadd.f32 %v333, %v413
    %v415 = vpop.f32.mrb[0].mxu0
    %416 = vdwg.mxu0
    %s417 = scalar_lea.vmem [#allocation3], 32
    %v418 = vld [vmem:[%s417] sm:$0xff]
    %v419 = vld [vmem:[%s417 + $0x8] sm:$0xff]
    %v421 = vsel %vm71, %v418, 0
    %v424 = vsel %vm71, %v419, 0
    %426 = vmatprep.subr.mxu0 0.0
    %427 = vmatpush1.msra.mxu0 %v65
    %428 = vmatprep.subr.mxu0 0.0
    %429 = vmatpush1.msra.mxu0 %v66
    %430 = vmatprep.subr.mxu0 0.0
    %431 = vmatpush1.msra.mxu0 %v67
    %432 = vmatprep.subr.mxu0 0.0
    %433 = vmatpush1.msra.mxu0 %v68
    %434 = vmatprep.subr.mxu0 0.0
    %435 = vmatpush1.msra.mxu0 0.0
    %436 = vmatprep.subr.mxu0 0.0
    %437 = vmatpush1.msra.mxu0 0.0
    %438 = vmatprep.subr.mxu0 0.0
    %439 = vmatpush1.msra.mxu0 0.0
    %440 = vmatprep.subr.mxu0 0.0
    %441 = vmatpush1.msra.mxu0 0.0
    %442 = vmatprep.subr.mxu0 0.0
    %443 = vmatpush1.msra.mxu0 0.0
    %444 = vmatprep.subr.mxu0 0.0
    %445 = vmatpush1.msra.mxu0 0.0
    %446 = vmatprep.subr.mxu0 0.0
    %447 = vmatpush1.msra.mxu0 0.0
    %448 = vmatprep.subr.mxu0 0.0
    %449 = vmatpush1.msra.mxu0 0.0
    %450 = vmatprep.subr.mxu0 0.0
    %451 = vmatpush1.msra.mxu0 0.0
    %452 = vmatprep.subr.mxu0 0.0
    %453 = vmatpush1.msra.mxu0 0.0
    %454 = vmatprep.subr.mxu0 0.0
    %455 = vmatpush1.msra.mxu0 0.0
    %456 = vmatprep.subr.mxu0 0.0
    %457 = vmatpush1.msra.mxu0 0.0
    %458 = vmatprep.subr.mxu0 0.0
    %459 = vmatpush1.msra.mxu0 0.0
    %460 = vmatprep.subr.mxu0 0.0
    %461 = vmatpush1.msra.mxu0 0.0
    %462 = vmatprep.subr.mxu0 0.0
    %463 = vmatpush1.msra.mxu0 0.0
    %464 = vmatprep.subr.mxu0 0.0
    %465 = vmatpush1.msra.mxu0 0.0
    %466 = vmatprep.subr.mxu0 0.0
    %467 = vmatpush1.msra.mxu0 0.0
    %468 = vmatprep.subr.mxu0 0.0
    %469 = vmatpush1.msra.mxu0 0.0
    %470 = vmatprep.subr.mxu0 0.0
    %471 = vmatpush1.msra.mxu0 0.0
    %472 = vmatprep.subr.mxu0 0.0
    %473 = vmatpush1.msra.mxu0 0.0
    %474 = vmatprep.subr.mxu0 0.0
    %475 = vmatpush1.msra.mxu0 0.0
    %476 = vmatprep.subr.mxu0 0.0
    %477 = vmatpush1.msra.mxu0 0.0
    %478 = vmatprep.subr.mxu0 0.0
    %479 = vmatpush1.msra.mxu0 0.0
    %480 = vmatprep.subr.mxu0 0.0
    %481 = vmatpush1.msra.mxu0 0.0
    %482 = vmatprep.subr.mxu0 0.0
    %483 = vmatpush1.msra.mxu0 0.0
    %484 = vmatprep.subr.mxu0 0.0
    %485 = vmatpush1.msra.mxu0 0.0
    %486 = vmatprep.subr.mxu0 0.0
    %487 = vmatpush1.msra.mxu0 0.0
    %488 = vmatprep.subr.mxu0 0.0
    %489 = vmatpush1.msra.mxu0 0.0
    %490 = vmatprep.mubr.f32.mxu0 0.0
    %491 = vmatmul.mubr.f32.gmra.mrb[0].mxu0 %v421
    %v492 = vpop.f32.mrb[0].mxu0
    %v493 = vadd.f32 0.0, %v492
    %v494 = vpop.f32.mrb[0].mxu0
    %495 = vmatprep.mubr.f32.mxu0 0.0
    %496 = vmatmul.mubr.f32.gmra.mrb[0].mxu0 %v424
    %v497 = vpop.f32.mrb[0].mxu0
    %v498 = vadd.f32 0.0, %v497
    %v499 = vpop.f32.mrb[0].mxu0
    %500 = vdwg.mxu0
    %s501 = scalar_lea.vmem [#allocation5], 128
    %v502 = vld [vmem:[%s501] sm:$0xff]
    %v503 = vld [vmem:[%s501 + $0x8] sm:$0xff]
    %v504 = vld [vmem:[%s501 + $0x10] sm:$0xff]
    %v505 = vld [vmem:[%s501 + $0x18] sm:$0xff]
    %v506 = vld [vmem:[%s501 + $0x20] sm:$0xff]
    %v507 = vld [vmem:[%s501 + $0x28] sm:$0xff]
    %v508 = vld [vmem:[%s501 + $0x30] sm:$0xff]
    %v509 = vld [vmem:[%s501 + $0x38] sm:$0xff]
    %v511 = vsel %vm254, %v493, 0
    %v514 = vsel %vm254, %v498, 0
    %516 = vmatprep.subr.mxu0 0.0
    %517 = vmatpush1.msra.mxu0 %v502
    %518 = vmatprep.subr.mxu0 0.0
    %519 = vmatpush1.msra.mxu0 %v503
    %520 = vmatprep.subr.mxu0 0.0
    %521 = vmatpush1.msra.mxu0 %v504
    %522 = vmatprep.subr.mxu0 0.0
    %523 = vmatpush1.msra.mxu0 %v505
    %524 = vmatprep.subr.mxu0 0.0
    %525 = vmatpush1.msra.mxu0 %v506
    %526 = vmatprep.subr.mxu0 0.0
    %527 = vmatpush1.msra.mxu0 %v507
    %528 = vmatprep.subr.mxu0 0.0
    %529 = vmatpush1.msra.mxu0 %v508
    %530 = vmatprep.subr.mxu0 0.0
    %531 = vmatpush1.msra.mxu0 %v509
    %532 = vmatprep.subr.mxu0 0.0
    %533 = vmatpush1.msra.mxu0 0.0
    %534 = vmatprep.subr.mxu0 0.0
    %535 = vmatpush1.msra.mxu0 0.0
    %536 = vmatprep.subr.mxu0 0.0
    %537 = vmatpush1.msra.mxu0 0.0
    %538 = vmatprep.subr.mxu0 0.0
    %539 = vmatpush1.msra.mxu0 0.0
    %540 = vmatprep.subr.mxu0 0.0
    %541 = vmatpush1.msra.mxu0 0.0
    %542 = vmatprep.subr.mxu0 0.0
    %543 = vmatpush1.msra.mxu0 0.0
    %544 = vmatprep.subr.mxu0 0.0
    %545 = vmatpush1.msra.mxu0 0.0
    %546 = vmatprep.subr.mxu0 0.0
    %547 = vmatpush1.msra.mxu0 0.0
    %548 = vmatprep.subr.mxu0 0.0
    %549 = vmatpush1.msra.mxu0 0.0
    %550 = vmatprep.subr.mxu0 0.0
    %551 = vmatpush1.msra.mxu0 0.0
    %552 = vmatprep.subr.mxu0 0.0
    %553 = vmatpush1.msra.mxu0 0.0
    %554 = vmatprep.subr.mxu0 0.0
    %555 = vmatpush1.msra.mxu0 0.0
    %556 = vmatprep.subr.mxu0 0.0
    %557 = vmatpush1.msra.mxu0 0.0
    %558 = vmatprep.subr.mxu0 0.0
    %559 = vmatpush1.msra.mxu0 0.0
    %560 = vmatprep.subr.mxu0 0.0
    %561 = vmatpush1.msra.mxu0 0.0
    %562 = vmatprep.subr.mxu0 0.0
    %563 = vmatpush1.msra.mxu0 0.0
    %564 = vmatprep.subr.mxu0 0.0
    %565 = vmatpush1.msra.mxu0 0.0
    %566 = vmatprep.subr.mxu0 0.0
    %567 = vmatpush1.msra.mxu0 0.0
    %568 = vmatprep.subr.mxu0 0.0
    %569 = vmatpush1.msra.mxu0 0.0
    %570 = vmatprep.subr.mxu0 0.0
    %571 = vmatpush1.msra.mxu0 0.0
    %572 = vmatprep.subr.mxu0 0.0
    %573 = vmatpush1.msra.mxu0 0.0
    %574 = vmatprep.subr.mxu0 0.0
    %575 = vmatpush1.msra.mxu0 0.0
    %576 = vmatprep.subr.mxu0 0.0
    %577 = vmatpush1.msra.mxu0 0.0
    %578 = vmatprep.subr.mxu0 0.0
    %579 = vmatpush1.msra.mxu0 0.0
    %580 = vmatprep.mubr.f32.mxu0 0.0
    %581 = vmatmul.mubr.f32.gmra.mrb[0].mxu0 %v511
    %v582 = vpop.f32.mrb[0].mxu0
    %v583 = vadd.f32 0.0, %v582
    %v584 = vpop.f32.mrb[0].mxu0
    %585 = vmatprep.mubr.f32.mxu0 0.0
    %586 = vmatmul.mubr.f32.gmra.mrb[0].mxu0 %v514
    %v587 = vpop.f32.mrb[0].mxu0
    %v588 = vadd.f32 0.0, %v587
    %v589 = vpop.f32.mrb[0].mxu0
    %590 = vdwg.mxu0
    %v591 = vadd.f32 %v409, %v583
    %v592 = vadd.f32 %v414, %v588
    %s593 = scalar_lea.vmem [#allocation3], 48
    %v594 = vld [vmem:[%s593] sm:$0xff]
    %v595 = vld [vmem:[%s593 + $0x8] sm:$0xff]
    %v597 = vsel %vm71, %v594, 0
    %v600 = vsel %vm71, %v595, 0
    %602 = vmatprep.subr.mxu0 0.0
    %603 = vmatpush1.msra.mxu0 %v65
    %604 = vmatprep.subr.mxu0 0.0
    %605 = vmatpush1.msra.mxu0 %v66
    %606 = vmatprep.subr.mxu0 0.0
    %607 = vmatpush1.msra.mxu0 %v67
    %608 = vmatprep.subr.mxu0 0.0
    %609 = vmatpush1.msra.mxu0 %v68
    %610 = vmatprep.subr.mxu0 0.0
    %611 = vmatpush1.msra.mxu0 0.0
    %612 = vmatprep.subr.mxu0 0.0
    %613 = vmatpush1.msra.mxu0 0.0
    %614 = vmatprep.subr.mxu0 0.0
    %615 = vmatpush1.msra.mxu0 0.0
    %616 = vmatprep.subr.mxu0 0.0
    %617 = vmatpush1.msra.mxu0 0.0
    %618 = vmatprep.subr.mxu0 0.0
    %619 = vmatpush1.msra.mxu0 0.0
    %620 = vmatprep.subr.mxu0 0.0
    %621 = vmatpush1.msra.mxu0 0.0
    %622 = vmatprep.subr.mxu0 0.0
    %623 = vmatpush1.msra.mxu0 0.0
    %624 = vmatprep.subr.mxu0 0.0
    %625 = vmatpush1.msra.mxu0 0.0
    %626 = vmatprep.subr.mxu0 0.0
    %627 = vmatpush1.msra.mxu0 0.0
    %628 = vmatprep.subr.mxu0 0.0
    %629 = vmatpush1.msra.mxu0 0.0
    %630 = vmatprep.subr.mxu0 0.0
    %631 = vmatpush1.msra.mxu0 0.0
    %632 = vmatprep.subr.mxu0 0.0
    %633 = vmatpush1.msra.mxu0 0.0
    %634 = vmatprep.subr.mxu0 0.0
    %635 = vmatpush1.msra.mxu0 0.0
    %636 = vmatprep.subr.mxu0 0.0
    %637 = vmatpush1.msra.mxu0 0.0
    %638 = vmatprep.subr.mxu0 0.0
    %639 = vmatpush1.msra.mxu0 0.0
    %640 = vmatprep.subr.mxu0 0.0
    %641 = vmatpush1.msra.mxu0 0.0
    %642 = vmatprep.subr.mxu0 0.0
    %643 = vmatpush1.msra.mxu0 0.0
    %644 = vmatprep.subr.mxu0 0.0
    %645 = vmatpush1.msra.mxu0 0.0
    %646 = vmatprep.subr.mxu0 0.0
    %647 = vmatpush1.msra.mxu0 0.0
    %648 = vmatprep.subr.mxu0 0.0
    %649 = vmatpush1.msra.mxu0 0.0
    %650 = vmatprep.subr.mxu0 0.0
    %651 = vmatpush1.msra.mxu0 0.0
    %652 = vmatprep.subr.mxu0 0.0
    %653 = vmatpush1.msra.mxu0 0.0
    %654 = vmatprep.subr.mxu0 0.0
    %655 = vmatpush1.msra.mxu0 0.0
    %656 = vmatprep.subr.mxu0 0.0
    %657 = vmatpush1.msra.mxu0 0.0
    %658 = vmatprep.subr.mxu0 0.0
    %659 = vmatpush1.msra.mxu0 0.0
    %660 = vmatprep.subr.mxu0 0.0
    %661 = vmatpush1.msra.mxu0 0.0
    %662 = vmatprep.subr.mxu0 0.0
    %663 = vmatpush1.msra.mxu0 0.0
    %664 = vmatprep.subr.mxu0 0.0
    %665 = vmatpush1.msra.mxu0 0.0
    %666 = vmatprep.mubr.f32.mxu0 0.0
    %667 = vmatmul.mubr.f32.gmra.mrb[0].mxu0 %v597
    %v668 = vpop.f32.mrb[0].mxu0
    %v669 = vadd.f32 0.0, %v668
    %v670 = vpop.f32.mrb[0].mxu0
    %671 = vmatprep.mubr.f32.mxu0 0.0
    %672 = vmatmul.mubr.f32.gmra.mrb[0].mxu0 %v600
    %v673 = vpop.f32.mrb[0].mxu0
    %v674 = vadd.f32 0.0, %v673
    %v675 = vpop.f32.mrb[0].mxu0
    %676 = vdwg.mxu0
    %s677 = scalar_lea.vmem [#allocation5], 192
    %v678 = vld [vmem:[%s677] sm:$0xff]
    %v679 = vld [vmem:[%s677 + $0x8] sm:$0xff]
    %v680 = vld [vmem:[%s677 + $0x10] sm:$0xff]
    %v681 = vld [vmem:[%s677 + $0x18] sm:$0xff]
    %v682 = vld [vmem:[%s677 + $0x20] sm:$0xff]
    %v683 = vld [vmem:[%s677 + $0x28] sm:$0xff]
    %v684 = vld [vmem:[%s677 + $0x30] sm:$0xff]
    %v685 = vld [vmem:[%s677 + $0x38] sm:$0xff]
    %v687 = vsel %vm254, %v669, 0
    %v690 = vsel %vm254, %v674, 0
    %692 = vmatprep.subr.mxu0 0.0
    %693 = vmatpush1.msra.mxu0 %v678
    %694 = vmatprep.subr.mxu0 0.0
    %695 = vmatpush1.msra.mxu0 %v679
    %696 = vmatprep.subr.mxu0 0.0
    %697 = vmatpush1.msra.mxu0 %v680
    %698 = vmatprep.subr.mxu0 0.0
    %699 = vmatpush1.msra.mxu0 %v681
    %700 = vmatprep.subr.mxu0 0.0
    %701 = vmatpush1.msra.mxu0 %v682
    %702 = vmatprep.subr.mxu0 0.0
    %703 = vmatpush1.msra.mxu0 %v683
    %704 = vmatprep.subr.mxu0 0.0
    %705 = vmatpush1.msra.mxu0 %v684
    %706 = vmatprep.subr.mxu0 0.0
    %707 = vmatpush1.msra.mxu0 %v685
    %708 = vmatprep.subr.mxu0 0.0
    %709 = vmatpush1.msra.mxu0 0.0
    %710 = vmatprep.subr.mxu0 0.0
    %711 = vmatpush1.msra.mxu0 0.0
    %712 = vmatprep.subr.mxu0 0.0
    %713 = vmatpush1.msra.mxu0 0.0
    %714 = vmatprep.subr.mxu0 0.0
    %715 = vmatpush1.msra.mxu0 0.0
    %716 = vmatprep.subr.mxu0 0.0
    %717 = vmatpush1.msra.mxu0 0.0
    %718 = vmatprep.subr.mxu0 0.0
    %719 = vmatpush1.msra.mxu0 0.0
    %720 = vmatprep.subr.mxu0 0.0
    %721 = vmatpush1.msra.mxu0 0.0
    %722 = vmatprep.subr.mxu0 0.0
    %723 = vmatpush1.msra.mxu0 0.0
    %724 = vmatprep.subr.mxu0 0.0
    %725 = vmatpush1.msra.mxu0 0.0
    %726 = vmatprep.subr.mxu0 0.0
    %727 = vmatpush1.msra.mxu0 0.0
    %728 = vmatprep.subr.mxu0 0.0
    %729 = vmatpush1.msra.mxu0 0.0
    %730 = vmatprep.subr.mxu0 0.0
    %731 = vmatpush1.msra.mxu0 0.0
    %732 = vmatprep.subr.mxu0 0.0
    %733 = vmatpush1.msra.mxu0 0.0
    %734 = vmatprep.subr.mxu0 0.0
    %735 = vmatpush1.msra.mxu0 0.0
    %736 = vmatprep.subr.mxu0 0.0
    %737 = vmatpush1.msra.mxu0 0.0
    %738 = vmatprep.subr.mxu0 0.0
    %739 = vmatpush1.msra.mxu0 0.0
    %740 = vmatprep.subr.mxu0 0.0
    %741 = vmatpush1.msra.mxu0 0.0
    %742 = vmatprep.subr.mxu0 0.0
    %743 = vmatpush1.msra.mxu0 0.0
    %744 = vmatprep.subr.mxu0 0.0
    %745 = vmatpush1.msra.mxu0 0.0
    %746 = vmatprep.subr.mxu0 0.0
    %747 = vmatpush1.msra.mxu0 0.0
    %748 = vmatprep.subr.mxu0 0.0
    %749 = vmatpush1.msra.mxu0 0.0
    %750 = vmatprep.subr.mxu0 0.0
    %751 = vmatpush1.msra.mxu0 0.0
    %752 = vmatprep.subr.mxu0 0.0
    %753 = vmatpush1.msra.mxu0 0.0
    %754 = vmatprep.subr.mxu0 0.0
    %755 = vmatpush1.msra.mxu0 0.0
    %756 = vmatprep.mubr.f32.mxu0 0.0
    %757 = vmatmul.mubr.f32.gmra.mrb[0].mxu0 %v687
    %v758 = vpop.f32.mrb[0].mxu0
    %v759 = vadd.f32 0.0, %v758
    %v760 = vpop.f32.mrb[0].mxu0
    %761 = vmatprep.mubr.f32.mxu0 0.0
    %762 = vmatmul.mubr.f32.gmra.mrb[0].mxu0 %v690
    %v763 = vpop.f32.mrb[0].mxu0
    %v764 = vadd.f32 0.0, %v763
    %v765 = vpop.f32.mrb[0].mxu0
    %766 = vdwg.mxu0
    %v767 = vadd.f32 %v591, %v759
    %v768 = vadd.f32 %v592, %v764
    %v769 = vld [vmem:[%s3] sm:$0x1]
    %v771 = vlaneseq
    %v772 = vshrl.u32 %v771, 7
    %v773 = vsub.s32 0, %v772
    %v774 = vrot.slane %v769, %v773
    %v776 = vadd.f32 %v767, %v774
    %v777 = vadd.f32 %v768, %v774
    %vm778 = vcmp.ge.f32.partialorder %v776, 0.0
    %vm779 = vcmp.ge.f32.partialorder %v777, 0.0
    %v780 = vmul.f32 %v776, 0.2
    %v781 = vmul.f32 %v777, 0.2
    %v782 = vsel %vm778, %v776, %v780
    %v783 = vsel %vm779, %v777, %v781
    %v784 = vld [vmem:[%s4] sm:$0xff]
    %vm785 = vcmask 130048
    %v787 = vsel %vm785, %v784, 0
    %789 = vmatprep.subr.mxu0 0.0
    %790 = vmatpush1.msra.mxu0 %v782
    %791 = vmatprep.subr.mxu0 0.0
    %792 = vmatpush1.msra.mxu0 %v783
    %793 = vmatprep.subr.mxu0 0.0
    %794 = vmatpush1.msra.mxu0 0.0
    %795 = vmatprep.subr.mxu0 0.0
    %796 = vmatpush1.msra.mxu0 0.0
    %797 = vmatprep.subr.mxu0 0.0
    %798 = vmatpush1.msra.mxu0 0.0
    %799 = vmatprep.subr.mxu0 0.0
    %800 = vmatpush1.msra.mxu0 0.0
    %801 = vmatprep.subr.mxu0 0.0
    %802 = vmatpush1.msra.mxu0 0.0
    %803 = vmatprep.subr.mxu0 0.0
    %804 = vmatpush1.msra.mxu0 0.0
    %805 = vmatprep.subr.mxu0 0.0
    %806 = vmatpush1.msra.mxu0 0.0
    %807 = vmatprep.subr.mxu0 0.0
    %808 = vmatpush1.msra.mxu0 0.0
    %809 = vmatprep.subr.mxu0 0.0
    %810 = vmatpush1.msra.mxu0 0.0
    %811 = vmatprep.subr.mxu0 0.0
    %812 = vmatpush1.msra.mxu0 0.0
    %813 = vmatprep.subr.mxu0 0.0
    %814 = vmatpush1.msra.mxu0 0.0
    %815 = vmatprep.subr.mxu0 0.0
    %816 = vmatpush1.msra.mxu0 0.0
    %817 = vmatprep.subr.mxu0 0.0
    %818 = vmatpush1.msra.mxu0 0.0
    %819 = vmatprep.subr.mxu0 0.0
    %820 = vmatpush1.msra.mxu0 0.0
    %821 = vmatprep.subr.mxu0 0.0
    %822 = vmatpush1.msra.mxu0 0.0
    %823 = vmatprep.subr.mxu0 0.0
    %824 = vmatpush1.msra.mxu0 0.0
    %825 = vmatprep.subr.mxu0 0.0
    %826 = vmatpush1.msra.mxu0 0.0
    %827 = vmatprep.subr.mxu0 0.0
    %828 = vmatpush1.msra.mxu0 0.0
    %829 = vmatprep.subr.mxu0 0.0
    %830 = vmatpush1.msra.mxu0 0.0
    %831 = vmatprep.subr.mxu0 0.0
    %832 = vmatpush1.msra.mxu0 0.0
    %833 = vmatprep.subr.mxu0 0.0
    %834 = vmatpush1.msra.mxu0 0.0
    %835 = vmatprep.subr.mxu0 0.0
    %836 = vmatpush1.msra.mxu0 0.0
    %837 = vmatprep.subr.mxu0 0.0
    %838 = vmatpush1.msra.mxu0 0.0
    %839 = vmatprep.subr.mxu0 0.0
    %840 = vmatpush1.msra.mxu0 0.0
    %841 = vmatprep.subr.mxu0 0.0
    %842 = vmatpush1.msra.mxu0 0.0
    %843 = vmatprep.subr.mxu0 0.0
    %844 = vmatpush1.msra.mxu0 0.0
    %845 = vmatprep.subr.mxu0 0.0
    %846 = vmatpush1.msra.mxu0 0.0
    %847 = vmatprep.subr.mxu0 0.0
    %848 = vmatpush1.msra.mxu0 0.0
    %849 = vmatprep.subr.mxu0 0.0
    %850 = vmatpush1.msra.mxu0 0.0
    %851 = vmatprep.subr.mxu0 0.0
    %852 = vmatpush1.msra.mxu0 0.0
    %853 = vmatprep.mubr.f32.mxu0 0.0
    %854 = vmatmul.mubr.f32.gmra.mrb[0].mxu0 %v787
    %v855 = vpop.f32.mrb[0].mxu0
    %v856 = vadd.f32 0.0, %v855
    %v857 = vpop.f32.mrb[0].mxu0
    %858 = vdwg.mxu0
    %v859 = vld [vmem:[%s5] sm:$0xff]
    %v860 = vld [vmem:[%s5 + $0x8] sm:$0xff]
    %v861 = vld [vmem:[%s5 + $0x10] sm:$0xff]
    %v862 = vld [vmem:[%s5 + $0x18] sm:$0xff]
    %v863 = vld [vmem:[%s5 + $0x20] sm:$0xff]
    %v864 = vld [vmem:[%s5 + $0x28] sm:$0xff]
    %v865 = vld [vmem:[%s5 + $0x30] sm:$0xff]
    %v866 = vld [vmem:[%s5 + $0x38] sm:$0xff]
    %v867 = vld [vmem:[%s5 + $0x40] sm:$0xff]
    %v868 = vld [vmem:[%s5 + $0x48] sm:$0xff]
    %v869 = vld [vmem:[%s5 + $0x50] sm:$0xff]
    %v870 = vld [vmem:[%s5 + $0x58] sm:$0xff]
    %v871 = vld [vmem:[%s5 + $0x60] sm:$0xff]
    %v872 = vld [vmem:[%s5 + $0x68] sm:$0xff]
    %v873 = vld [vmem:[%s5 + $0x70] sm:$0xff]
    %v874 = vld [vmem:[%s5 + $0x78] sm:$0xff]
    %s875 = scalar_lea.vmem %s4, 8
    %v876 = vld [vmem:[%s875] sm:$0xff]
    %v878 = vsel %vm785, %v876, 0
    %880 = vmatprep.subr.mxu0 0.0
    %881 = vmatpush1.msra.mxu0 %v782
    %882 = vmatprep.subr.mxu0 0.0
    %883 = vmatpush1.msra.mxu0 %v783
    %884 = vmatprep.subr.mxu0 0.0
    %885 = vmatpush1.msra.mxu0 0.0
    %886 = vmatprep.subr.mxu0 0.0
    %887 = vmatpush1.msra.mxu0 0.0
    %888 = vmatprep.subr.mxu0 0.0
    %889 = vmatpush1.msra.mxu0 0.0
    %890 = vmatprep.subr.mxu0 0.0
    %891 = vmatpush1.msra.mxu0 0.0
    %892 = vmatprep.subr.mxu0 0.0
    %893 = vmatpush1.msra.mxu0 0.0
    %894 = vmatprep.subr.mxu0 0.0
    %895 = vmatpush1.msra.mxu0 0.0
    %896 = vmatprep.subr.mxu0 0.0
    %897 = vmatpush1.msra.mxu0 0.0
    %898 = vmatprep.subr.mxu0 0.0
    %899 = vmatpush1.msra.mxu0 0.0
    %900 = vmatprep.subr.mxu0 0.0
    %901 = vmatpush1.msra.mxu0 0.0
    %902 = vmatprep.subr.mxu0 0.0
    %903 = vmatpush1.msra.mxu0 0.0
    %904 = vmatprep.subr.mxu0 0.0
    %905 = vmatpush1.msra.mxu0 0.0
    %906 = vmatprep.subr.mxu0 0.0
    %907 = vmatpush1.msra.mxu0 0.0
    %908 = vmatprep.subr.mxu0 0.0
    %909 = vmatpush1.msra.mxu0 0.0
    %910 = vmatprep.subr.mxu0 0.0
    %911 = vmatpush1.msra.mxu0 0.0
    %912 = vmatprep.subr.mxu0 0.0
    %913 = vmatpush1.msra.mxu0 0.0
    %914 = vmatprep.subr.mxu0 0.0
    %915 = vmatpush1.msra.mxu0 0.0
    %916 = vmatprep.subr.mxu0 0.0
    %917 = vmatpush1.msra.mxu0 0.0
    %918 = vmatprep.subr.mxu0 0.0
    %919 = vmatpush1.msra.mxu0 0.0
    %920 = vmatprep.subr.mxu0 0.0
    %921 = vmatpush1.msra.mxu0 0.0
    %922 = vmatprep.subr.mxu0 0.0
    %923 = vmatpush1.msra.mxu0 0.0
    %924 = vmatprep.subr.mxu0 0.0
    %925 = vmatpush1.msra.mxu0 0.0
    %926 = vmatprep.subr.mxu0 0.0
    %927 = vmatpush1.msra.mxu0 0.0
    %928 = vmatprep.subr.mxu0 0.0
    %929 = vmatpush1.msra.mxu0 0.0
    %930 = vmatprep.subr.mxu0 0.0
    %931 = vmatpush1.msra.mxu0 0.0
    %932 = vmatprep.subr.mxu0 0.0
    %933 = vmatpush1.msra.mxu0 0.0
    %934 = vmatprep.subr.mxu0 0.0
    %935 = vmatpush1.msra.mxu0 0.0
    %936 = vmatprep.subr.mxu0 0.0
    %937 = vmatpush1.msra.mxu0 0.0
    %938 = vmatprep.subr.mxu0 0.0
    %939 = vmatpush1.msra.mxu0 0.0
    %940 = vmatprep.subr.mxu0 0.0
    %941 = vmatpush1.msra.mxu0 0.0
    %942 = vmatprep.subr.mxu0 0.0
    %943 = vmatpush1.msra.mxu0 0.0
    %944 = vmatprep.mubr.f32.mxu0 0.0
    %945 = vmatmul.mubr.f32.gmra.mrb[0].mxu0 %v878
    %v946 = vpop.f32.mrb[0].mxu0
    %v947 = vadd.f32 0.0, %v946
    %v948 = vpop.f32.mrb[0].mxu0
    %949 = vdwg.mxu0
    %s950 = scalar_lea.vmem %s5, 128
    %v951 = vld [vmem:[%s950] sm:$0xff]
    %v952 = vld [vmem:[%s950 + $0x8] sm:$0xff]
    %v953 = vld [vmem:[%s950 + $0x10] sm:$0xff]
    %v954 = vld [vmem:[%s950 + $0x18] sm:$0xff]
    %v955 = vld [vmem:[%s950 + $0x20] sm:$0xff]
    %v956 = vld [vmem:[%s950 + $0x28] sm:$0xff]
    %v957 = vld [vmem:[%s950 + $0x30] sm:$0xff]
    %v958 = vld [vmem:[%s950 + $0x38] sm:$0xff]
    %v959 = vld [vmem:[%s950 + $0x40] sm:$0xff]
    %v960 = vld [vmem:[%s950 + $0x48] sm:$0xff]
    %v961 = vld [vmem:[%s950 + $0x50] sm:$0xff]
    %v962 = vld [vmem:[%s950 + $0x58] sm:$0xff]
    %v963 = vld [vmem:[%s950 + $0x60] sm:$0xff]
    %v964 = vld [vmem:[%s950 + $0x68] sm:$0xff]
    %v965 = vld [vmem:[%s950 + $0x70] sm:$0xff]
    %v966 = vld [vmem:[%s950 + $0x78] sm:$0xff]
    %967 = vmatprep.subr.mxu0 0.0
    %968 = vmatpush1.msra.mxu0 %v951
    %969 = vmatprep.subr.mxu0 0.0
    %970 = vmatpush1.msra.mxu0 %v952
    %971 = vmatprep.subr.mxu0 0.0
    %972 = vmatpush1.msra.mxu0 %v953
    %973 = vmatprep.subr.mxu0 0.0
    %974 = vmatpush1.msra.mxu0 %v954
    %975 = vmatprep.subr.mxu0 0.0
    %976 = vmatpush1.msra.mxu0 %v955
    %977 = vmatprep.subr.mxu0 0.0
    %978 = vmatpush1.msra.mxu0 %v956
    %979 = vmatprep.subr.mxu0 0.0
    %980 = vmatpush1.msra.mxu0 %v957
    %981 = vmatprep.subr.mxu0 0.0
    %982 = vmatpush1.msra.mxu0 %v958
    %983 = vmatprep.subr.mxu0 0.0
    %984 = vmatpush1.msra.mxu0 %v959
    %985 = vmatprep.subr.mxu0 0.0
    %986 = vmatpush1.msra.mxu0 %v960
    %987 = vmatprep.subr.mxu0 0.0
    %988 = vmatpush1.msra.mxu0 %v961
    %989 = vmatprep.subr.mxu0 0.0
    %990 = vmatpush1.msra.mxu0 %v962
    %991 = vmatprep.subr.mxu0 0.0
    %992 = vmatpush1.msra.mxu0 %v963
    %993 = vmatprep.subr.mxu0 0.0
    %994 = vmatpush1.msra.mxu0 %v964
    %995 = vmatprep.subr.mxu0 0.0
    %996 = vmatpush1.msra.mxu0 %v965
    %997 = vmatprep.subr.mxu0 0.0
    %998 = vmatpush1.msra.mxu0 %v966
    %999 = vmatprep.subr.mxu0 0.0
    %1000 = vmatpush1.msra.mxu0 0.0
    %1001 = vmatprep.subr.mxu0 0.0
    %1002 = vmatpush1.msra.mxu0 0.0
    %1003 = vmatprep.subr.mxu0 0.0
    %1004 = vmatpush1.msra.mxu0 0.0
    %1005 = vmatprep.subr.mxu0 0.0
    %1006 = vmatpush1.msra.mxu0 0.0
    %1007 = vmatprep.subr.mxu0 0.0
    %1008 = vmatpush1.msra.mxu0 0.0
    %1009 = vmatprep.subr.mxu0 0.0
    %1010 = vmatpush1.msra.mxu0 0.0
    %1011 = vmatprep.subr.mxu0 0.0
    %1012 = vmatpush1.msra.mxu0 0.0
    %1013 = vmatprep.subr.mxu0 0.0
    %1014 = vmatpush1.msra.mxu0 0.0
    %1015 = vmatprep.subr.mxu0 0.0
    %1016 = vmatpush1.msra.mxu0 0.0
    %1017 = vmatprep.subr.mxu0 0.0
    %1018 = vmatpush1.msra.mxu0 0.0
    %1019 = vmatprep.subr.mxu0 0.0
    %1020 = vmatpush1.msra.mxu0 0.0
    %1021 = vmatprep.subr.mxu0 0.0
    %1022 = vmatpush1.msra.mxu0 0.0
    %1023 = vmatprep.subr.mxu0 0.0
    %1024 = vmatpush1.msra.mxu0 0.0
    %1025 = vmatprep.subr.mxu0 0.0
    %1026 = vmatpush1.msra.mxu0 0.0
    %1027 = vmatprep.subr.mxu0 0.0
    %1028 = vmatpush1.msra.mxu0 0.0
    %1029 = vmatprep.subr.mxu0 0.0
    %1030 = vmatpush1.msra.mxu0 0.0
    %1031 = vmatprep.mubr.f32.mxu0 0.0
    %1032 = vmatmul.mubr.f32.gmra.mrb[0].mxu0 %v947
    %v1033 = vpop.f32.mrb[0].mxu0
    %v1034 = vadd.f32 0.0, %v1033
    %v1035 = vpop.f32.mrb[0].mxu0
    %1036 = vdwg.mxu0
    %1037 = vmatprep.subr.mxu0 0.0
    %1038 = vmatpush1.msra.mxu0 %v859
    %1039 = vmatprep.subr.mxu0 0.0
    %1040 = vmatpush1.msra.mxu0 %v860
    %1041 = vmatprep.subr.mxu0 0.0
    %1042 = vmatpush1.msra.mxu0 %v861
    %1043 = vmatprep.subr.mxu0 0.0
    %1044 = vmatpush1.msra.mxu0 %v862
    %1045 = vmatprep.subr.mxu0 0.0
    %1046 = vmatpush1.msra.mxu0 %v863
    %1047 = vmatprep.subr.mxu0 0.0
    %1048 = vmatpush1.msra.mxu0 %v864
    %1049 = vmatprep.subr.mxu0 0.0
    %1050 = vmatpush1.msra.mxu0 %v865
    %1051 = vmatprep.subr.mxu0 0.0
    %1052 = vmatpush1.msra.mxu0 %v866
    %1053 = vmatprep.subr.mxu0 0.0
    %1054 = vmatpush1.msra.mxu0 %v867
    %1055 = vmatprep.subr.mxu0 0.0
    %1056 = vmatpush1.msra.mxu0 %v868
    %1057 = vmatprep.subr.mxu0 0.0
    %1058 = vmatpush1.msra.mxu0 %v869
    %1059 = vmatprep.subr.mxu0 0.0
    %1060 = vmatpush1.msra.mxu0 %v870
    %1061 = vmatprep.subr.mxu0 0.0
    %1062 = vmatpush1.msra.mxu0 %v871
    %1063 = vmatprep.subr.mxu0 0.0
    %1064 = vmatpush1.msra.mxu0 %v872
    %1065 = vmatprep.subr.mxu0 0.0
    %1066 = vmatpush1.msra.mxu0 %v873
    %1067 = vmatprep.subr.mxu0 0.0
    %1068 = vmatpush1.msra.mxu0 %v874
    %1069 = vmatprep.subr.mxu0 0.0
    %1070 = vmatpush1.msra.mxu0 0.0
    %1071 = vmatprep.subr.mxu0 0.0
    %1072 = vmatpush1.msra.mxu0 0.0
    %1073 = vmatprep.subr.mxu0 0.0
    %1074 = vmatpush1.msra.mxu0 0.0
    %1075 = vmatprep.subr.mxu0 0.0
    %1076 = vmatpush1.msra.mxu0 0.0
    %1077 = vmatprep.subr.mxu0 0.0
    %1078 = vmatpush1.msra.mxu0 0.0
    %1079 = vmatprep.subr.mxu0 0.0
    %1080 = vmatpush1.msra.mxu0 0.0
    %1081 = vmatprep.subr.mxu0 0.0
    %1082 = vmatpush1.msra.mxu0 0.0
    %1083 = vmatprep.subr.mxu0 0.0
    %1084 = vmatpush1.msra.mxu0 0.0
    %1085 = vmatprep.subr.mxu0 0.0
    %1086 = vmatpush1.msra.mxu0 0.0
    %1087 = vmatprep.subr.mxu0 0.0
    %1088 = vmatpush1.msra.mxu0 0.0
    %1089 = vmatprep.subr.mxu0 0.0
    %1090 = vmatpush1.msra.mxu0 0.0
    %1091 = vmatprep.subr.mxu0 0.0
    %1092 = vmatpush1.msra.mxu0 0.0
    %1093 = vmatprep.subr.mxu0 0.0
    %1094 = vmatpush1.msra.mxu0 0.0
    %1095 = vmatprep.subr.mxu0 0.0
    %1096 = vmatpush1.msra.mxu0 0.0
    %1097 = vmatprep.subr.mxu0 0.0
    %1098 = vmatpush1.msra.mxu0 0.0
    %1099 = vmatprep.subr.mxu0 0.0
    %1100 = vmatpush1.msra.mxu0 0.0
    %1101 = vmatprep.mubr.f32.mxu0 0.0
    %1102 = vmatmul.mubr.f32.gmra.mrb[0].mxu0 %v856
    %v1103 = vpop.f32.mrb[0].mxu0
    %v1104 = vadd.f32 %v1034, %v1103
    %v1105 = vpop.f32.mrb[0].mxu0
    %1106 = vdwg.mxu0
    %s1107 = scalar_lea.vmem %s4, 16
    %v1108 = vld [vmem:[%s1107] sm:$0xff]
    %v1110 = vsel %vm785, %v1108, 0
    %1112 = vmatprep.subr.mxu0 0.0
    %1113 = vmatpush1.msra.mxu0 %v782
    %1114 = vmatprep.subr.mxu0 0.0
    %1115 = vmatpush1.msra.mxu0 %v783
    %1116 = vmatprep.subr.mxu0 0.0
    %1117 = vmatpush1.msra.mxu0 0.0
    %1118 = vmatprep.subr.mxu0 0.0
    %1119 = vmatpush1.msra.mxu0 0.0
    %1120 = vmatprep.subr.mxu0 0.0
    %1121 = vmatpush1.msra.mxu0 0.0
    %1122 = vmatprep.subr.mxu0 0.0
    %1123 = vmatpush1.msra.mxu0 0.0
    %1124 = vmatprep.subr.mxu0 0.0
    %1125 = vmatpush1.msra.mxu0 0.0
    %1126 = vmatprep.subr.mxu0 0.0
    %1127 = vmatpush1.msra.mxu0 0.0
    %1128 = vmatprep.subr.mxu0 0.0
    %1129 = vmatpush1.msra.mxu0 0.0
    %1130 = vmatprep.subr.mxu0 0.0
    %1131 = vmatpush1.msra.mxu0 0.0
    %1132 = vmatprep.subr.mxu0 0.0
    %1133 = vmatpush1.msra.mxu0 0.0
    %1134 = vmatprep.subr.mxu0 0.0
    %1135 = vmatpush1.msra.mxu0 0.0
    %1136 = vmatprep.subr.mxu0 0.0
    %1137 = vmatpush1.msra.mxu0 0.0
    %1138 = vmatprep.subr.mxu0 0.0
    %1139 = vmatpush1.msra.mxu0 0.0
    %1140 = vmatprep.subr.mxu0 0.0
    %1141 = vmatpush1.msra.mxu0 0.0
    %1142 = vmatprep.subr.mxu0 0.0
    %1143 = vmatpush1.msra.mxu0 0.0
    %1144 = vmatprep.subr.mxu0 0.0
    %1145 = vmatpush1.msra.mxu0 0.0
    %1146 = vmatprep.subr.mxu0 0.0
    %1147 = vmatpush1.msra.mxu0 0.0
    %1148 = vmatprep.subr.mxu0 0.0
    %1149 = vmatpush1.msra.mxu0 0.0
    %1150 = vmatprep.subr.mxu0 0.0
    %1151 = vmatpush1.msra.mxu0 0.0
    %1152 = vmatprep.subr.mxu0 0.0
    %1153 = vmatpush1.msra.mxu0 0.0
    %1154 = vmatprep.subr.mxu0 0.0
    %1155 = vmatpush1.msra.mxu0 0.0
    %1156 = vmatprep.subr.mxu0 0.0
    %1157 = vmatpush1.msra.mxu0 0.0
    %1158 = vmatprep.subr.mxu0 0.0
    %1159 = vmatpush1.msra.mxu0 0.0
    %1160 = vmatprep.subr.mxu0 0.0
    %1161 = vmatpush1.msra.mxu0 0.0
    %1162 = vmatprep.subr.mxu0 0.0
    %1163 = vmatpush1.msra.mxu0 0.0
    %1164 = vmatprep.subr.mxu0 0.0
    %1165 = vmatpush1.msra.mxu0 0.0
    %1166 = vmatprep.subr.mxu0 0.0
    %1167 = vmatpush1.msra.mxu0 0.0
    %1168 = vmatprep.subr.mxu0 0.0
    %1169 = vmatpush1.msra.mxu0 0.0
    %1170 = vmatprep.subr.mxu0 0.0
    %1171 = vmatpush1.msra.mxu0 0.0
    %1172 = vmatprep.subr.mxu0 0.0
    %1173 = vmatpush1.msra.mxu0 0.0
    %1174 = vmatprep.subr.mxu0 0.0
    %1175 = vmatpush1.msra.mxu0 0.0
    %1176 = vmatprep.mubr.f32.mxu0 0.0
    %1177 = vmatmul.mubr.f32.gmra.mrb[0].mxu0 %v1110
    %v1178 = vpop.f32.mrb[0].mxu0
    %v1179 = vadd.f32 0.0, %v1178
    %v1180 = vpop.f32.mrb[0].mxu0
    %1181 = vdwg.mxu0
    %s1182 = scalar_lea.vmem %s5, 256
    %v1183 = vld [vmem:[%s1182] sm:$0xff]
    %v1184 = vld [vmem:[%s1182 + $0x8] sm:$0xff]
    %v1185 = vld [vmem:[%s1182 + $0x10] sm:$0xff]
    %v1186 = vld [vmem:[%s1182 + $0x18] sm:$0xff]
    %v1187 = vld [vmem:[%s1182 + $0x20] sm:$0xff]
    %v1188 = vld [vmem:[%s1182 + $0x28] sm:$0xff]
    %v1189 = vld [vmem:[%s1182 + $0x30] sm:$0xff]
    %v1190 = vld [vmem:[%s1182 + $0x38] sm:$0xff]
    %v1191 = vld [vmem:[%s1182 + $0x40] sm:$0xff]
    %v1192 = vld [vmem:[%s1182 + $0x48] sm:$0xff]
    %v1193 = vld [vmem:[%s1182 + $0x50] sm:$0xff]
    %v1194 = vld [vmem:[%s1182 + $0x58] sm:$0xff]
    %v1195 = vld [vmem:[%s1182 + $0x60] sm:$0xff]
    %v1196 = vld [vmem:[%s1182 + $0x68] sm:$0xff]
    %v1197 = vld [vmem:[%s1182 + $0x70] sm:$0xff]
    %v1198 = vld [vmem:[%s1182 + $0x78] sm:$0xff]
    %1199 = vmatprep.subr.mxu0 0.0
    %1200 = vmatpush1.msra.mxu0 %v1183
    %1201 = vmatprep.subr.mxu0 0.0
    %1202 = vmatpush1.msra.mxu0 %v1184
    %1203 = vmatprep.subr.mxu0 0.0
    %1204 = vmatpush1.msra.mxu0 %v1185
    %1205 = vmatprep.subr.mxu0 0.0
    %1206 = vmatpush1.msra.mxu0 %v1186
    %1207 = vmatprep.subr.mxu0 0.0
    %1208 = vmatpush1.msra.mxu0 %v1187
    %1209 = vmatprep.subr.mxu0 0.0
    %1210 = vmatpush1.msra.mxu0 %v1188
    %1211 = vmatprep.subr.mxu0 0.0
    %1212 = vmatpush1.msra.mxu0 %v1189
    %1213 = vmatprep.subr.mxu0 0.0
    %1214 = vmatpush1.msra.mxu0 %v1190
    %1215 = vmatprep.subr.mxu0 0.0
    %1216 = vmatpush1.msra.mxu0 %v1191
    %1217 = vmatprep.subr.mxu0 0.0
    %1218 = vmatpush1.msra.mxu0 %v1192
    %1219 = vmatprep.subr.mxu0 0.0
    %1220 = vmatpush1.msra.mxu0 %v1193
    %1221 = vmatprep.subr.mxu0 0.0
    %1222 = vmatpush1.msra.mxu0 %v1194
    %1223 = vmatprep.subr.mxu0 0.0
    %1224 = vmatpush1.msra.mxu0 %v1195
    %1225 = vmatprep.subr.mxu0 0.0
    %1226 = vmatpush1.msra.mxu0 %v1196
    %1227 = vmatprep.subr.mxu0 0.0
    %1228 = vmatpush1.msra.mxu0 %v1197
    %1229 = vmatprep.subr.mxu0 0.0
    %1230 = vmatpush1.msra.mxu0 %v1198
    %1231 = vmatprep.subr.mxu0 0.0
    %1232 = vmatpush1.msra.mxu0 0.0
    %1233 = vmatprep.subr.mxu0 0.0
    %1234 = vmatpush1.msra.mxu0 0.0
    %1235 = vmatprep.subr.mxu0 0.0
    %1236 = vmatpush1.msra.mxu0 0.0
    %1237 = vmatprep.subr.mxu0 0.0
    %1238 = vmatpush1.msra.mxu0 0.0
    %1239 = vmatprep.subr.mxu0 0.0
    %1240 = vmatpush1.msra.mxu0 0.0
    %1241 = vmatprep.subr.mxu0 0.0
    %1242 = vmatpush1.msra.mxu0 0.0
    %1243 = vmatprep.subr.mxu0 0.0
    %1244 = vmatpush1.msra.mxu0 0.0
    %1245 = vmatprep.subr.mxu0 0.0
    %1246 = vmatpush1.msra.mxu0 0.0
    %1247 = vmatprep.subr.mxu0 0.0
    %1248 = vmatpush1.msra.mxu0 0.0
    %1249 = vmatprep.subr.mxu0 0.0
    %1250 = vmatpush1.msra.mxu0 0.0
    %1251 = vmatprep.subr.mxu0 0.0
    %1252 = vmatpush1.msra.mxu0 0.0
    %1253 = vmatprep.subr.mxu0 0.0
    %1254 = vmatpush1.msra.mxu0 0.0
    %1255 = vmatprep.subr.mxu0 0.0
    %1256 = vmatpush1.msra.mxu0 0.0
    %1257 = vmatprep.subr.mxu0 0.0
    %1258 = vmatpush1.msra.mxu0 0.0
    %1259 = vmatprep.subr.mxu0 0.0
    %1260 = vmatpush1.msra.mxu0 0.0
    %1261 = vmatprep.subr.mxu0 0.0
    %1262 = vmatpush1.msra.mxu0 0.0
    %1263 = vmatprep.mubr.f32.mxu0 0.0
    %1264 = vmatmul.mubr.f32.gmra.mrb[0].mxu0 %v1179
    %v1265 = vpop.f32.mrb[0].mxu0
    %v1266 = vadd.f32 0.0, %v1265
    %v1267 = vpop.f32.mrb[0].mxu0
    %1268 = vdwg.mxu0
    %v1269 = vadd.f32 %v1104, %v1266
    %s1270 = scalar_lea.vmem %s4, 24
    %v1271 = vld [vmem:[%s1270] sm:$0xff]
    %v1273 = vsel %vm785, %v1271, 0
    %1275 = vmatprep.subr.mxu0 0.0
    %1276 = vmatpush1.msra.mxu0 %v782
    %1277 = vmatprep.subr.mxu0 0.0
    %1278 = vmatpush1.msra.mxu0 %v783
    %1279 = vmatprep.subr.mxu0 0.0
    %1280 = vmatpush1.msra.mxu0 0.0
    %1281 = vmatprep.subr.mxu0 0.0
    %1282 = vmatpush1.msra.mxu0 0.0
    %1283 = vmatprep.subr.mxu0 0.0
    %1284 = vmatpush1.msra.mxu0 0.0
    %1285 = vmatprep.subr.mxu0 0.0
    %1286 = vmatpush1.msra.mxu0 0.0
    %1287 = vmatprep.subr.mxu0 0.0
    %1288 = vmatpush1.msra.mxu0 0.0
    %1289 = vmatprep.subr.mxu0 0.0
    %1290 = vmatpush1.msra.mxu0 0.0
    %1291 = vmatprep.subr.mxu0 0.0
    %1292 = vmatpush1.msra.mxu0 0.0
    %1293 = vmatprep.subr.mxu0 0.0
    %1294 = vmatpush1.msra.mxu0 0.0
    %1295 = vmatprep.subr.mxu0 0.0
    %1296 = vmatpush1.msra.mxu0 0.0
    %1297 = vmatprep.subr.mxu0 0.0
    %1298 = vmatpush1.msra.mxu0 0.0
    %1299 = vmatprep.subr.mxu0 0.0
    %1300 = vmatpush1.msra.mxu0 0.0
    %1301 = vmatprep.subr.mxu0 0.0
    %1302 = vmatpush1.msra.mxu0 0.0
    %1303 = vmatprep.subr.mxu0 0.0
    %1304 = vmatpush1.msra.mxu0 0.0
    %1305 = vmatprep.subr.mxu0 0.0
    %1306 = vmatpush1.msra.mxu0 0.0
    %1307 = vmatprep.subr.mxu0 0.0
    %1308 = vmatpush1.msra.mxu0 0.0
    %1309 = vmatprep.subr.mxu0 0.0
    %1310 = vmatpush1.msra.mxu0 0.0
    %1311 = vmatprep.subr.mxu0 0.0
    %1312 = vmatpush1.msra.mxu0 0.0
    %1313 = vmatprep.subr.mxu0 0.0
    %1314 = vmatpush1.msra.mxu0 0.0
    %1315 = vmatprep.subr.mxu0 0.0
    %1316 = vmatpush1.msra.mxu0 0.0
    %1317 = vmatprep.subr.mxu0 0.0
    %1318 = vmatpush1.msra.mxu0 0.0
    %1319 = vmatprep.subr.mxu0 0.0
    %1320 = vmatpush1.msra.mxu0 0.0
    %1321 = vmatprep.subr.mxu0 0.0
    %1322 = vmatpush1.msra.mxu0 0.0
    %1323 = vmatprep.subr.mxu0 0.0
    %1324 = vmatpush1.msra.mxu0 0.0
    %1325 = vmatprep.subr.mxu0 0.0
    %1326 = vmatpush1.msra.mxu0 0.0
    %1327 = vmatprep.subr.mxu0 0.0
    %1328 = vmatpush1.msra.mxu0 0.0
    %1329 = vmatprep.subr.mxu0 0.0
    %1330 = vmatpush1.msra.mxu0 0.0
    %1331 = vmatprep.subr.mxu0 0.0
    %1332 = vmatpush1.msra.mxu0 0.0
    %1333 = vmatprep.subr.mxu0 0.0
    %1334 = vmatpush1.msra.mxu0 0.0
    %1335 = vmatprep.subr.mxu0 0.0
    %1336 = vmatpush1.msra.mxu0 0.0
    %1337 = vmatprep.subr.mxu0 0.0
    %1338 = vmatpush1.msra.mxu0 0.0
    %1339 = vmatprep.mubr.f32.mxu0 0.0
    %1340 = vmatmul.mubr.f32.gmra.mrb[0].mxu0 %v1273
    %v1341 = vpop.f32.mrb[0].mxu0
    %v1342 = vadd.f32 0.0, %v1341
    %v1343 = vpop.f32.mrb[0].mxu0
    %1344 = vdwg.mxu0
    %s1345 = scalar_lea.vmem %s5, 384
    %v1346 = vld [vmem:[%s1345] sm:$0xff]
    %v1347 = vld [vmem:[%s1345 + $0x8] sm:$0xff]
    %v1348 = vld [vmem:[%s1345 + $0x10] sm:$0xff]
    %v1349 = vld [vmem:[%s1345 + $0x18] sm:$0xff]
    %v1350 = vld [vmem:[%s1345 + $0x20] sm:$0xff]
    %v1351 = vld [vmem:[%s1345 + $0x28] sm:$0xff]
    %v1352 = vld [vmem:[%s1345 + $0x30] sm:$0xff]
    %v1353 = vld [vmem:[%s1345 + $0x38] sm:$0xff]
    %v1354 = vld [vmem:[%s1345 + $0x40] sm:$0xff]
    %v1355 = vld [vmem:[%s1345 + $0x48] sm:$0xff]
    %v1356 = vld [vmem:[%s1345 + $0x50] sm:$0xff]
    %v1357 = vld [vmem:[%s1345 + $0x58] sm:$0xff]
    %v1358 = vld [vmem:[%s1345 + $0x60] sm:$0xff]
    %v1359 = vld [vmem:[%s1345 + $0x68] sm:$0xff]
    %v1360 = vld [vmem:[%s1345 + $0x70] sm:$0xff]
    %v1361 = vld [vmem:[%s1345 + $0x78] sm:$0xff]
    %1362 = vmatprep.subr.mxu0 0.0
    %1363 = vmatpush1.msra.mxu0 %v1346
    %1364 = vmatprep.subr.mxu0 0.0
    %1365 = vmatpush1.msra.mxu0 %v1347
    %1366 = vmatprep.subr.mxu0 0.0
    %1367 = vmatpush1.msra.mxu0 %v1348
    %1368 = vmatprep.subr.mxu0 0.0
    %1369 = vmatpush1.msra.mxu0 %v1349
    %1370 = vmatprep.subr.mxu0 0.0
    %1371 = vmatpush1.msra.mxu0 %v1350
    %1372 = vmatprep.subr.mxu0 0.0
    %1373 = vmatpush1.msra.mxu0 %v1351
    %1374 = vmatprep.subr.mxu0 0.0
    %1375 = vmatpush1.msra.mxu0 %v1352
    %1376 = vmatprep.subr.mxu0 0.0
    %1377 = vmatpush1.msra.mxu0 %v1353
    %1378 = vmatprep.subr.mxu0 0.0
    %1379 = vmatpush1.msra.mxu0 %v1354
    %1380 = vmatprep.subr.mxu0 0.0
    %1381 = vmatpush1.msra.mxu0 %v1355
    %1382 = vmatprep.subr.mxu0 0.0
    %1383 = vmatpush1.msra.mxu0 %v1356
    %1384 = vmatprep.subr.mxu0 0.0
    %1385 = vmatpush1.msra.mxu0 %v1357
    %1386 = vmatprep.subr.mxu0 0.0
    %1387 = vmatpush1.msra.mxu0 %v1358
    %1388 = vmatprep.subr.mxu0 0.0
    %1389 = vmatpush1.msra.mxu0 %v1359
    %1390 = vmatprep.subr.mxu0 0.0
    %1391 = vmatpush1.msra.mxu0 %v1360
    %1392 = vmatprep.subr.mxu0 0.0
    %1393 = vmatpush1.msra.mxu0 %v1361
    %1394 = vmatprep.subr.mxu0 0.0
    %1395 = vmatpush1.msra.mxu0 0.0
    %1396 = vmatprep.subr.mxu0 0.0
    %1397 = vmatpush1.msra.mxu0 0.0
    %1398 = vmatprep.subr.mxu0 0.0
    %1399 = vmatpush1.msra.mxu0 0.0
    %1400 = vmatprep.subr.mxu0 0.0
    %1401 = vmatpush1.msra.mxu0 0.0
    %1402 = vmatprep.subr.mxu0 0.0
    %1403 = vmatpush1.msra.mxu0 0.0
    %1404 = vmatprep.subr.mxu0 0.0
    %1405 = vmatpush1.msra.mxu0 0.0
    %1406 = vmatprep.subr.mxu0 0.0
    %1407 = vmatpush1.msra.mxu0 0.0
    %1408 = vmatprep.subr.mxu0 0.0
    %1409 = vmatpush1.msra.mxu0 0.0
    %1410 = vmatprep.subr.mxu0 0.0
    %1411 = vmatpush1.msra.mxu0 0.0
    %1412 = vmatprep.subr.mxu0 0.0
    %1413 = vmatpush1.msra.mxu0 0.0
    %1414 = vmatprep.subr.mxu0 0.0
    %1415 = vmatpush1.msra.mxu0 0.0
    %1416 = vmatprep.subr.mxu0 0.0
    %1417 = vmatpush1.msra.mxu0 0.0
    %1418 = vmatprep.subr.mxu0 0.0
    %1419 = vmatpush1.msra.mxu0 0.0
    %1420 = vmatprep.subr.mxu0 0.0
    %1421 = vmatpush1.msra.mxu0 0.0
    %1422 = vmatprep.subr.mxu0 0.0
    %1423 = vmatpush1.msra.mxu0 0.0
    %1424 = vmatprep.subr.mxu0 0.0
    %1425 = vmatpush1.msra.mxu0 0.0
    %1426 = vmatprep.mubr.f32.mxu0 0.0
    %1427 = vmatmul.mubr.f32.gmra.mrb[0].mxu0 %v1342
    %v1428 = vpop.f32.mrb[0].mxu0
    %v1429 = vadd.f32 0.0, %v1428
    %v1430 = vpop.f32.mrb[0].mxu0
    %1431 = vdwg.mxu0
    %v1432 = vadd.f32 %v1269, %v1429
    %v1433 = vld [vmem:[%s6] sm:$0x1]
    %v1435 = vlaneseq
    %v1436 = vshrl.u32 %v1435, 7
    %v1437 = vsub.s32 0, %v1436
    %v1438 = vrot.slane %v1433, %v1437
    %v1440 = vadd.f32 %v1432, %v1438
    %vm1441 = vcmp.ge.f32.partialorder %v1440, 0.0
    %v1442 = vmul.f32 %v1440, 0.2
    %v1443 = vsel %vm1441, %v1440, %v1442
    %v1444 = vld [vmem:[%s7] sm:$0xff]
    %v1445 = vmul.f32 %v1443, %v1444
    %v1446 = vld [vmem:[%s8] sm:$0x3]
    %vm1447 = vcmask 64512
    %v1449 = vsel %vm1447, %v1446, 0
    %1451 = vmatprep.subr.mxu0 0.0
    %1452 = vmatpush1.msra.mxu0 %v1445
    %1453 = vmatprep.subr.mxu0 0.0
    %1454 = vmatpush1.msra.mxu0 0.0
    %1455 = vmatprep.subr.mxu0 0.0
    %1456 = vmatpush1.msra.mxu0 0.0
    %1457 = vmatprep.subr.mxu0 0.0
    %1458 = vmatpush1.msra.mxu0 0.0
    %1459 = vmatprep.subr.mxu0 0.0
    %1460 = vmatpush1.msra.mxu0 0.0
    %1461 = vmatprep.subr.mxu0 0.0
    %1462 = vmatpush1.msra.mxu0 0.0
    %1463 = vmatprep.subr.mxu0 0.0
    %1464 = vmatpush1.msra.mxu0 0.0
    %1465 = vmatprep.subr.mxu0 0.0
    %1466 = vmatpush1.msra.mxu0 0.0
    %1467 = vmatprep.subr.mxu0 0.0
    %1468 = vmatpush1.msra.mxu0 0.0
    %1469 = vmatprep.subr.mxu0 0.0
    %1470 = vmatpush1.msra.mxu0 0.0
    %1471 = vmatprep.subr.mxu0 0.0
    %1472 = vmatpush1.msra.mxu0 0.0
    %1473 = vmatprep.subr.mxu0 0.0
    %1474 = vmatpush1.msra.mxu0 0.0
    %1475 = vmatprep.subr.mxu0 0.0
    %1476 = vmatpush1.msra.mxu0 0.0
    %1477 = vmatprep.subr.mxu0 0.0
    %1478 = vmatpush1.msra.mxu0 0.0
    %1479 = vmatprep.subr.mxu0 0.0
    %1480 = vmatpush1.msra.mxu0 0.0
    %1481 = vmatprep.subr.mxu0 0.0
    %1482 = vmatpush1.msra.mxu0 0.0
    %1483 = vmatprep.subr.mxu0 0.0
    %1484 = vmatpush1.msra.mxu0 0.0
    %1485 = vmatprep.subr.mxu0 0.0
    %1486 = vmatpush1.msra.mxu0 0.0
    %1487 = vmatprep.subr.mxu0 0.0
    %1488 = vmatpush1.msra.mxu0 0.0
    %1489 = vmatprep.subr.mxu0 0.0
    %1490 = vmatpush1.msra.mxu0 0.0
    %1491 = vmatprep.subr.mxu0 0.0
    %1492 = vmatpush1.msra.mxu0 0.0
    %1493 = vmatprep.subr.mxu0 0.0
    %1494 = vmatpush1.msra.mxu0 0.0
    %1495 = vmatprep.subr.mxu0 0.0
    %1496 = vmatpush1.msra.mxu0 0.0
    %1497 = vmatprep.subr.mxu0 0.0
    %1498 = vmatpush1.msra.mxu0 0.0
    %1499 = vmatprep.subr.mxu0 0.0
    %1500 = vmatpush1.msra.mxu0 0.0
    %1501 = vmatprep.subr.mxu0 0.0
    %1502 = vmatpush1.msra.mxu0 0.0
    %1503 = vmatprep.subr.mxu0 0.0
    %1504 = vmatpush1.msra.mxu0 0.0
    %1505 = vmatprep.subr.mxu0 0.0
    %1506 = vmatpush1.msra.mxu0 0.0
    %1507 = vmatprep.subr.mxu0 0.0
    %1508 = vmatpush1.msra.mxu0 0.0
    %1509 = vmatprep.subr.mxu0 0.0
    %1510 = vmatpush1.msra.mxu0 0.0
    %1511 = vmatprep.subr.mxu0 0.0
    %1512 = vmatpush1.msra.mxu0 0.0
    %1513 = vmatprep.subr.mxu0 0.0
    %1514 = vmatpush1.msra.mxu0 0.0
    %1515 = vmatprep.mubr.f32.mxu0 0.0
    %1516 = vmatmul.mubr.f32.gmra.mrb[0].mxu0 %v1449
    %v1517 = vpop.f32.mrb[0].mxu0
    %v1518 = vadd.f32 0.0, %v1517
    %v1519 = vpop.f32.mrb[0].mxu0
    %1520 = vdwg.mxu0
    %vm1521 = vcmask 1041408
    %v1522 = vsel %vm1521, %v1518, 0.0
    %1523 = vadd.xlane.f32.xlu0 %v1522
    %v1524 = vpop.xlane.xlu0 %1523
    %v1525 = vld [vmem:[#allocation2] sm:$0x1]
    %v1527 = vlaneseq
    %v1528 = vshrl.u32 %v1527, 7
    %v1529 = vsub.s32 0, %v1528
    %v1530 = vrot.slane %v1525, %v1529
    %v1532 = vadd.f32 %v1524, %v1530
    %vm1533 = vcmask 1024
    %1534 = vst.msk [vmem:[%s10] sm:$0x3] %vm1533, %v1532
    // Predicated region
    $region50: #{critic_forward.1} parent=1 // pred_check
      _
    $region51: #{critic_forward.1} parent=1 // pred_check_branch
      %1536 = sbr.rel (0) target = $region53
    $region52: #{critic_forward.1} parent=1 // pred_region
      _
    $region53: #{critic_forward.1} parent=1 // pred_fallthru
      _
    // Predicated region
    $region54: #{critic_forward.1} parent=1 // pred_check
      _
    $region55: #{critic_forward.1} parent=1 // pred_check_branch
      %1538 = sbr.rel (0) target = $region57
    $region56: #{critic_forward.1} parent=1 // pred_region
      _
    $region57: #{critic_forward.1} parent=1 // pred_fallthru
      _
    %1539 = vsyncpa [#allocation4], 1
    %1540 = vsyncpa [#allocation6], 1

</llo_original>
